<compile_context>
chip_gen: v7x
topology: tpu7x:2x2x1
jax: 0.10.0
libtpu: 0.0.40
codegen_flags: <defaults>
</compile_context>

<pallas_src>
import functools

import jax
import jax.numpy as jnp
from jax import lax
from jax.experimental import pallas as pl
from jax.experimental.pallas import tpu as pltpu


# Cityscapes class weights used by OhemCrossEntropy2d(use_weight=True) (19 classes).
_CITYSCAPES_WEIGHTS = (
    0.8373, 0.918, 0.866, 1.0345, 1.0166, 0.9969, 0.9754, 1.0489, 0.8786,
    1.0023, 0.9539, 0.9843, 1.1116, 0.9037, 1.0865, 1.0955, 1.0865, 1.1529,
    1.0507,
)


def _interp_matrix(out_size, in_size):
    """Bilinear (align_corners=True) interpolation weights, shape (out_size, in_size)."""
    if out_size == 1 or in_size == 1:
        src = jnp.zeros((out_size,), jnp.float32)
    else:
        src = jnp.arange(out_size, dtype=jnp.float32) * ((in_size - 1) / (out_size - 1))
    i0 = jnp.clip(jnp.floor(src).astype(jnp.int32), 0, in_size - 1)
    i1 = jnp.minimum(i0 + 1, in_size - 1)
    frac = src - i0.astype(jnp.float32)
    cols = jnp.arange(in_size, dtype=jnp.int32)
    w0 = (1.0 - frac)[:, None] * (cols[None, :] == i0[:, None]).astype(jnp.float32)
    w1 = frac[:, None] * (cols[None, :] == i1[:, None]).astype(jnp.float32)
    return w0 + w1


def _vmem_limit_bytes():
    cap = 64 * 1024 * 1024  # conservative fallback (v7x-sized)
    try:
        info = pltpu.get_tpu_info()
        cap = int(getattr(info, "vmem_capacity_bytes", cap))
    except Exception:
        pass
    return int(cap * 0.8)


def _estimate_tile_vmem(TH, C, h, w, W_pad):
    """Rough per-grid-step live-set estimate (bytes) for the fused kernel."""
    bf, f32, dbl = 2, 4, 2
    fixed = C * h * w * bf * dbl + w * W_pad * bf * dbl           # logits + Bm (double-buffered)
    per_row = (W_pad * 4 * dbl                                    # target tile
               + h * bf * dbl                                     # A tile
               + W_pad * f32 * dbl                                # output tile
               + C * h * bf                                       # A broadcast
               + C * w * (f32 + bf)                               # rows-interp intermediate v
               + C * W_pad * f32                                  # upsampled logits z
               + 6 * W_pad * f32)                                 # class-loop temporaries
    return fixed + TH * per_row


def _pick_row_tile(H, C, h, w, W_pad, budget_bytes, max_tile=512):
    """Largest row tile that divides H, satisfies the (8,128) rule and fits the VMEM budget."""
    candidates = [t for t in range(min(H, max_tile), 0, -1)
                  if H % t == 0 and (t % 8 == 0 or t == H)]
    for t in candidates:
        if _estimate_tile_vmem(t, C, h, w, W_pad) <= budget_bytes:
            return t
    return candidates[-1] if candidates else H


# --------------------------------------------------------------------------------------
# Fused kernel: bilinear upsample (MXU) + per-pixel log-softmax at GT class (VPU/EUP)
# --------------------------------------------------------------------------------------
def _logp_gt_kernel(logits_ref, target_ref, a_ref, bm_ref, out_ref, *, num_classes):
    C = num_classes
    x = logits_ref[...]            # (C, h, w)   bf16 low-res logits for this (head, batch)
    A = a_ref[...]                 # (TH, h)     bf16 row-interp weights for this row tile
    Bm = bm_ref[...]               # (w, W_pad)  bf16 col-interp weights
    t = target_ref[...]            # (TH, W_pad) int32 labels
    TH, h = A.shape
    w, Wp = Bm.shape

    # --- bilinear upsample (align_corners=True), rows-first on the tile ----------------
    #   v[c,t,w] = sum_h A[t,h] x[c,h,w]   (batched over C; only the tiny A is broadcast)
    #   z[c,t,W] = sum_w v[c,t,w] Bm[w,W]  (one large 2D matmul, C folded into M)
    a_b = jnp.broadcast_to(A[None], (C, TH, h))
    v = lax.dot_general(a_b, x, (((2,), (1,)), ((0,), (0,))),
                        preferred_element_type=jnp.float32)            # (C, TH, w) f32
    z = jnp.dot(v.astype(jnp.bfloat16).reshape(C * TH, w), Bm,
                preferred_element_type=jnp.float32).reshape(C, TH, Wp)  # (C, TH, Wp) f32

    # --- per-pixel log-softmax at the GT class (static unroll over C, leading-dim slices)
    m = z[0]
    for c in range(1, C):
        m = jnp.maximum(m, z[c])
    s = jnp.zeros((TH, Wp), jnp.float32)   # softmax denominator
    zgt = jnp.zeros((TH, Wp), jnp.float32)  # logit at the GT class (stays 0 for ignored labels)
    for c in range(C):
        zc = z[c]
        s = s + jnp.exp(zc - m)
        zgt = jnp.where(t == c, zc, zgt)
    out_ref[...] = zgt - m - jnp.log(s)     # log softmax prob at GT class


def _logp_gt_pallas(logits, target, ignore_index):
    """logits: (n_heads, B, C, h, w); target: (B, H, W) int.
    Returns (n_heads, B, H, W) f32 log-softmax prob at the GT class
    (a meaningless-but-finite value where target == ignore_index; mask downstream)."""
    NH, B, C, h, w = logits.shape
    Bt, H, W = target.shape
    assert Bt == B

    # Pad output width to a multiple of 128 so output tiles / stores are lane-dense.
    W_pad = W if W % 128 == 0 else (W // 128 + 1) * 128
    A = _interp_matrix(H, h).astype(jnp.bfloat16)                      # (H, h)
    Bm = _interp_matrix(W, w).T                                        # (w, W)
    if W_pad != W:
        Bm = jnp.pad(Bm, ((0, 0), (0, W_pad - W)))
        target_p = jnp.pad(target, ((0, 0), (0, 0), (0, W_pad - W)),
                           constant_values=ignore_index)
    else:
        target_p = target
    Bm = Bm.astype(jnp.bfloat16)

    vmem_limit = _vmem_limit_bytes()
    TH = _pick_row_tile(H, C, h, w, W_pad, budget_bytes=int(vmem_limit * 0.6))
    nH = H // TH

    out = pl.pallas_call(
        functools.partial(_logp_gt_kernel, num_classes=C),
        out_shape=jax.ShapeDtypeStruct((NH, B, H, W_pad), jnp.float32),
        grid_spec=pltpu.PrefetchScalarGridSpec(
            num_scalar_prefetch=0,
            grid=(NH, B, nH),
            in_specs=[
                pl.BlockSpec((None, None, C, h, w), lambda hd, b, i: (hd, b, 0, 0, 0)),
                pl.BlockSpec((None, TH, W_pad), lambda hd, b, i: (b, i, 0)),
                pl.BlockSpec((TH, h), lambda hd, b, i: (i, 0)),
                pl.BlockSpec((w, W_pad), lambda hd, b, i: (0, 0)),
            ],
            out_specs=pl.BlockSpec((None, None, TH, W_pad),
                                   lambda hd, b, i: (hd, b, i, 0)),
        ),
        compiler_params=pltpu.CompilerParams(
            dimension_semantics=("parallel", "parallel", "parallel"),
            vmem_limit_bytes=vmem_limit,
        ),
    )(logits.astype(jnp.bfloat16), target_p.astype(jnp.int32), A, Bm)
    return out[..., :W]   # strip the width padding


# --------------------------------------------------------------------------------------
# OHEM selection + weighted-mean reduction (plain JAX on the per-pixel maps)
# --------------------------------------------------------------------------------------
def _ohem_select_and_reduce(p_gt, nll_w, wgt, valid, thres, min_kept):
    # TODO(synk): the global k-th-smallest (full sort) could be replaced by a fixed-bin
    # histogram + cumulative count at production resolutions; an exact sort is kept here to
    # match the PyTorch OhemCrossEntropy2d threshold semantics exactly.
    num_valid = jnp.sum(valid.astype(jnp.int32))
    pred = jnp.where(valid, p_gt, jnp.inf).reshape(-1)
    sorted_pred = jnp.sort(pred)
    k = jnp.clip(jnp.minimum(jnp.int32(min_kept), num_valid) - 1, 0, pred.size - 1)
    thr_dyn = sorted_pred[k]
    threshold = jnp.maximum(jnp.float32(thres), thr_dyn)
    kept = jnp.where(min_kept >= num_valid, valid, valid & (p_gt <= threshold))
    num = jnp.sum(jnp.where(kept, nll_w, 0.0))
    den = jnp.sum(jnp.where(kept, wgt, 0.0))
    return num / den


class CriterionOhemDSNPallas:
    """DSN + OHEM criterion: dsn_weight * OhemCE(preds[0]) + OhemCE(preds[1])."""

    def __init__(self, ignore_index=255, thres=0.7, min_kept=100000,
                 dsn_weight=0.4, use_weight=True, num_classes=19):
        self.ignore_index = int(ignore_index)
        self.thres = float(thres)
        self.min_kept = int(min_kept)
        self.dsn_weight = float(dsn_weight)
        self.num_classes = int(num_classes)
        if use_weight and num_classes == len(_CITYSCAPES_WEIGHTS):
            self.class_weights = _CITYSCAPES_WEIGHTS
        else:
            self.class_weights = tuple(1.0 for _ in range(num_classes))

    def _reduce(self, logp_gt, target):
        valid = target != self.ignore_index
        cw = jnp.asarray(self.class_weights, jnp.float32)
        tc = jnp.clip(target, 0, self.num_classes - 1)
        wgt = jnp.where(valid, cw[tc], 0.0)     # per-pixel class weight (0 where ignored)
        p_gt = jnp.exp(logp_gt)                 # softmax prob at GT class (OHEM score)
        nll_w = -wgt * logp_gt                  # class-weighted unreduced NLL (0 where ignored)
        return _ohem_select_and_reduce(p_gt, nll_w, wgt, valid, self.thres, self.min_kept)

    def __call__(self, preds, target):
        p0, p1 = preds[0], preds[1]
        target = target.astype(jnp.int32)
        if p0.shape == p1.shape:
            # Fuse both DSN heads into one pallas_call (shared target / interp matrices).
            logp = _logp_gt_pallas(jnp.stack([p0, p1], axis=0), target, self.ignore_index)
            loss1 = self._reduce(logp[0], target)
            loss2 = self._reduce(logp[1], target)
        else:
            loss1 = self._reduce(_logp_gt_pallas(p0[None], target, self.ignore_index)[0], target)
            loss2 = self._reduce(_logp_gt_pallas(p1[None], target, self.ignore_index)[0], target)
        return self.dsn_weight * loss1 + loss2


# --------------------------------------------------------------------------------------
# Pure-JAX reference (independent gather-based upsample + softmax CE)
# --------------------------------------------------------------------------------------
def _upsample_bilinear_ref(x, H, W):
    B, C, h, w = x.shape

    def coords(out, inn):
        if out == 1 or inn == 1:
            src = jnp.zeros((out,), jnp.float32)
        else:
            src = jnp.arange(out, dtype=jnp.float32) * ((inn - 1) / (out - 1))
        i0 = jnp.clip(jnp.floor(src).astype(jnp.int32), 0, inn - 1)
        i1 = jnp.minimum(i0 + 1, inn - 1)
        return i0, i1, src - i0.astype(jnp.float32)

    r0, r1, fr = coords(H, h)
    c0, c1, fc = coords(W, w)
    xr = (x[:, :, r0, :] * (1.0 - fr)[None, None, :, None]
          + x[:, :, r1, :] * fr[None, None, :, None])                        # (B,C,H,w)
    return (xr[:, :, :, c0] * (1.0 - fc)[None, None, None, :]
            + xr[:, :, :, c1] * fc[None, None, None, :])                      # (B,C,H,W)


def _ohem_ce_ref(logits_up, target, class_weights, ignore_index, thres, min_kept):
    B, C, H, W = logits_up.shape
    cw = jnp.asarray(class_weights, jnp.float32)
    logp = jax.nn.log_softmax(logits_up.astype(jnp.float32), axis=1)
    prob = jnp.exp(logp)
    valid = target != ignore_index
    tc = jnp.clip(target, 0, C - 1)
    p_gt = jnp.take_along_axis(prob, tc[:, None], axis=1)[:, 0]
    logp_gt = jnp.take_along_axis(logp, tc[:, None], axis=1)[:, 0]
    w_gt = jnp.where(valid, cw[tc], 0.0)
    nll_w = jnp.where(valid, -w_gt * logp_gt, 0.0)
    return _ohem_select_and_reduce(p_gt, nll_w, w_gt, valid, thres, min_kept)


if __name__ == "__main__":
    B, C, h, w = 2, 19, 16, 16       # two DSN prediction heads at half target resolution
    H, W = 32, 32                    # target label map resolution

    key = jax.random.PRNGKey(0)
    k0, k1, k2, k3 = jax.random.split(key, 4)
    preds0 = jax.random.normal(k0, (B, C, h, w), dtype=jnp.float32)
    preds1 = jax.random.normal(k1, (B, C, h, w), dtype=jnp.float32)
    labels = jax.random.randint(k2, (B, H, W), 0, C, dtype=jnp.int32)
    ignore = jax.random.uniform(k3, (B, H, W)) < 0.1
    target = jnp.where(ignore, 255, labels).astype(jnp.int32)

    crit = CriterionOhemDSNPallas(ignore_index=255, thres=0.7, min_kept=100000,
                                  dsn_weight=0.4, use_weight=True, num_classes=C)
    loss = jax.block_until_ready(crit((preds0, preds1), target))

    # ---- reference of the full module -------------------------------------------------
    def ref_loss(pred):
        up = _upsample_bilinear_ref(pred, H, W)
        return _ohem_ce_ref(up, target, crit.class_weights, 255, 0.7, 100000)

    expected = 0.4 * ref_loss(preds0) + ref_loss(preds1)

    # ---- per-pixel logp_gt check for the fused kernel (head 0) ------------------------
    # Kernel matmuls run with bf16 MXU inputs (f32 accumulate) -> looser elementwise tol.
    logp_k = _logp_gt_pallas(jnp.stack([preds0, preds1], axis=0), target, 255)
    up0 = _upsample_bilinear_ref(preds0, H, W)
    logp_ref = jax.nn.log_softmax(up0, axis=1)
    tc = jnp.clip(target, 0, C - 1)
    valid = target != 255
    logp_gt_ref = jnp.take_along_axis(logp_ref, tc[:, None], axis=1)[:, 0]
    max_err = jnp.max(jnp.abs(jnp.where(valid, logp_k[0] - logp_gt_ref, 0.0)))
    assert float(max_err) < 7.5e-2, float(max_err)

    assert loss.shape == ()
    assert bool(jnp.isfinite(loss))
    assert jnp.allclose(loss, expected, atol=2e-2, rtol=2e-2), (float(loss), float(expected))
    print("KERNEL_OK")
</pallas_src>

<mosaic_0001>
module attributes {stable_mosaic.version = 11 : i64} {
  func.func @_logp_gt_kernel(%arg0: i32, %arg1: i32, %arg2: i32, %arg3: memref<1x1x19x16x16xbf16, #tpu.memory_space<vmem>>, %arg4: memref<1x32x128xi32, #tpu.memory_space<vmem>>, %arg5: memref<32x16xbf16, #tpu.memory_space<vmem>>, %arg6: memref<16x128xbf16, #tpu.memory_space<vmem>>, %arg7: memref<1x1x32x128xf32, #tpu.memory_space<vmem>>) attributes {dimension_semantics = [#tpu.dimension_semantics<parallel>, #tpu.dimension_semantics<parallel>, #tpu.dimension_semantics<parallel>], iteration_bounds = array<i64: 2, 2, 1>, scalar_prefetch = 0 : i64, scratch_operands = 0 : i64, tpu.core_type = #tpu.core_type<tc>, window_params = [{transform_indices = @transform_0, window_bounds = array<i64: 1, 1, 19, 16, 16>}, {transform_indices = @transform_1, window_bounds = array<i64: 1, 32, 128>}, {transform_indices = @transform_2, window_bounds = array<i64: 32, 16>}, {pipeline_mode = #tpu.pipeline_mode<synchronous>, transform_indices = @transform_3, window_bounds = array<i64: 16, 128>}, {transform_indices = @transform_4, window_bounds = array<i64: 1, 1, 32, 128>}]} {
    %c0 = arith.constant 0 : index
    %c0_0 = arith.constant 0 : index
    %c0_1 = arith.constant 0 : index
    %c0_2 = arith.constant 0 : index
    %c0_3 = arith.constant 0 : index
    %0 = vector.load %arg3[%c0, %c0_0, %c0_1, %c0_2, %c0_3] : memref<1x1x19x16x16xbf16, #tpu.memory_space<vmem>>, vector<1x1x19x16x16xbf16>
    %1 = vector.shape_cast %0 : vector<1x1x19x16x16xbf16> to vector<19x16x16xbf16>
    %c0_4 = arith.constant 0 : index
    %c0_5 = arith.constant 0 : index
    %2 = vector.load %arg5[%c0_4, %c0_5] : memref<32x16xbf16, #tpu.memory_space<vmem>>, vector<32x16xbf16>
    %c0_6 = arith.constant 0 : index
    %c0_7 = arith.constant 0 : index
    %3 = vector.load %arg6[%c0_6, %c0_7] : memref<16x128xbf16, #tpu.memory_space<vmem>>, vector<16x128xbf16>
    %c0_8 = arith.constant 0 : index
    %c0_9 = arith.constant 0 : index
    %c0_10 = arith.constant 0 : index
    %4 = vector.load %arg4[%c0_8, %c0_9, %c0_10] : memref<1x32x128xi32, #tpu.memory_space<vmem>>, vector<1x32x128xi32>
    %5 = vector.shape_cast %4 : vector<1x32x128xi32> to vector<32x128xi32>
    %6 = vector.shape_cast %2 : vector<32x16xbf16> to vector<1x32x16xbf16>
    %7 = vector.shape_cast %6 : vector<1x32x16xbf16> to vector<1x32x16xbf16>
    %8 = vector.broadcast %7 : vector<1x32x16xbf16> to vector<19x32x16xbf16>
    %cst = arith.constant dense<0.000000e+00> : vector<19x32x16xf32>
    %9 = tpu.matmul %8, %1, %cst {dimension_numbers = #tpu.dot_dimension_numbers<[2], [1], [1], [2], [0, 0, 0, 1, 1, 2], [0], [0]>} : vector<19x32x16xbf16>, vector<19x16x16xbf16>, vector<19x32x16xf32> -> vector<19x32x16xf32>
    %10 = arith.truncf %9 : vector<19x32x16xf32> to vector<19x32x16xbf16>
    %11 = vector.shape_cast %10 : vector<19x32x16xbf16> to vector<608x16xbf16>
    %cst_11 = arith.constant dense<0.000000e+00> : vector<608x128xf32>
    %12 = tpu.matmul %11, %3, %cst_11 {dimension_numbers = #tpu.dot_dimension_numbers<[1], [0], [0], [1], [0, 0, 1, 1], [], []>} : vector<608x16xbf16>, vector<16x128xbf16>, vector<608x128xf32> -> vector<608x128xf32>
    %13 = vector.shape_cast %12 : vector<608x128xf32> to vector<19x32x128xf32>
    %14 = vector.extract_strided_slice %13 {offsets = [0, 0, 0], sizes = [1, 32, 128], strides = [1, 1, 1]} : vector<19x32x128xf32> to vector<1x32x128xf32>
    %15 = vector.shape_cast %14 : vector<1x32x128xf32> to vector<32x128xf32>
    %16 = vector.extract_strided_slice %13 {offsets = [1, 0, 0], sizes = [1, 32, 128], strides = [1, 1, 1]} : vector<19x32x128xf32> to vector<1x32x128xf32>
    %17 = vector.shape_cast %16 : vector<1x32x128xf32> to vector<32x128xf32>
    %18 = arith.maximumf %15, %17 : vector<32x128xf32>
    %19 = vector.extract_strided_slice %13 {offsets = [2, 0, 0], sizes = [1, 32, 128], strides = [1, 1, 1]} : vector<19x32x128xf32> to vector<1x32x128xf32>
    %20 = vector.shape_cast %19 : vector<1x32x128xf32> to vector<32x128xf32>
    %21 = arith.maximumf %18, %20 : vector<32x128xf32>
    %22 = vector.extract_strided_slice %13 {offsets = [3, 0, 0], sizes = [1, 32, 128], strides = [1, 1, 1]} : vector<19x32x128xf32> to vector<1x32x128xf32>
    %23 = vector.shape_cast %22 : vector<1x32x128xf32> to vector<32x128xf32>
    %24 = arith.maximumf %21, %23 : vector<32x128xf32>
    %25 = vector.extract_strided_slice %13 {offsets = [4, 0, 0], sizes = [1, 32, 128], strides = [1, 1, 1]} : vector<19x32x128xf32> to vector<1x32x128xf32>
    %26 = vector.shape_cast %25 : vector<1x32x128xf32> to vector<32x128xf32>
    %27 = arith.maximumf %24, %26 : vector<32x128xf32>
    %28 = vector.extract_strided_slice %13 {offsets = [5, 0, 0], sizes = [1, 32, 128], strides = [1, 1, 1]} : vector<19x32x128xf32> to vector<1x32x128xf32>
    %29 = vector.shape_cast %28 : vector<1x32x128xf32> to vector<32x128xf32>
    %30 = arith.maximumf %27, %29 : vector<32x128xf32>
    %31 = vector.extract_strided_slice %13 {offsets = [6, 0, 0], sizes = [1, 32, 128], strides = [1, 1, 1]} : vector<19x32x128xf32> to vector<1x32x128xf32>
    %32 = vector.shape_cast %31 : vector<1x32x128xf32> to vector<32x128xf32>
    %33 = arith.maximumf %30, %32 : vector<32x128xf32>
    %34 = vector.extract_strided_slice %13 {offsets = [7, 0, 0], sizes = [1, 32, 128], strides = [1, 1, 1]} : vector<19x32x128xf32> to vector<1x32x128xf32>
    %35 = vector.shape_cast %34 : vector<1x32x128xf32> to vector<32x128xf32>
    %36 = arith.maximumf %33, %35 : vector<32x128xf32>
    %37 = vector.extract_strided_slice %13 {offsets = [8, 0, 0], sizes = [1, 32, 128], strides = [1, 1, 1]} : vector<19x32x128xf32> to vector<1x32x128xf32>
    %38 = vector.shape_cast %37 : vector<1x32x128xf32> to vector<32x128xf32>
    %39 = arith.maximumf %36, %38 : vector<32x128xf32>
    %40 = vector.extract_strided_slice %13 {offsets = [9, 0, 0], sizes = [1, 32, 128], strides = [1, 1, 1]} : vector<19x32x128xf32> to vector<1x32x128xf32>
    %41 = vector.shape_cast %40 : vector<1x32x128xf32> to vector<32x128xf32>
    %42 = arith.maximumf %39, %41 : vector<32x128xf32>
    %43 = vector.extract_strided_slice %13 {offsets = [10, 0, 0], sizes = [1, 32, 128], strides = [1, 1, 1]} : vector<19x32x128xf32> to vector<1x32x128xf32>
    %44 = vector.shape_cast %43 : vector<1x32x128xf32> to vector<32x128xf32>
    %45 = arith.maximumf %42, %44 : vector<32x128xf32>
    %46 = vector.extract_strided_slice %13 {offsets = [11, 0, 0], sizes = [1, 32, 128], strides = [1, 1, 1]} : vector<19x32x128xf32> to vector<1x32x128xf32>
    %47 = vector.shape_cast %46 : vector<1x32x128xf32> to vector<32x128xf32>
    %48 = arith.maximumf %45, %47 : vector<32x128xf32>
    %49 = vector.extract_strided_slice %13 {offsets = [12, 0, 0], sizes = [1, 32, 128], strides = [1, 1, 1]} : vector<19x32x128xf32> to vector<1x32x128xf32>
    %50 = vector.shape_cast %49 : vector<1x32x128xf32> to vector<32x128xf32>
    %51 = arith.maximumf %48, %50 : vector<32x128xf32>
    %52 = vector.extract_strided_slice %13 {offsets = [13, 0, 0], sizes = [1, 32, 128], strides = [1, 1, 1]} : vector<19x32x128xf32> to vector<1x32x128xf32>
    %53 = vector.shape_cast %52 : vector<1x32x128xf32> to vector<32x128xf32>
    %54 = arith.maximumf %51, %53 : vector<32x128xf32>
    %55 = vector.extract_strided_slice %13 {offsets = [14, 0, 0], sizes = [1, 32, 128], strides = [1, 1, 1]} : vector<19x32x128xf32> to vector<1x32x128xf32>
    %56 = vector.shape_cast %55 : vector<1x32x128xf32> to vector<32x128xf32>
    %57 = arith.maximumf %54, %56 : vector<32x128xf32>
    %58 = vector.extract_strided_slice %13 {offsets = [15, 0, 0], sizes = [1, 32, 128], strides = [1, 1, 1]} : vector<19x32x128xf32> to vector<1x32x128xf32>
    %59 = vector.shape_cast %58 : vector<1x32x128xf32> to vector<32x128xf32>
    %60 = arith.maximumf %57, %59 : vector<32x128xf32>
    %61 = vector.extract_strided_slice %13 {offsets = [16, 0, 0], sizes = [1, 32, 128], strides = [1, 1, 1]} : vector<19x32x128xf32> to vector<1x32x128xf32>
    %62 = vector.shape_cast %61 : vector<1x32x128xf32> to vector<32x128xf32>
    %63 = arith.maximumf %60, %62 : vector<32x128xf32>
    %64 = vector.extract_strided_slice %13 {offsets = [17, 0, 0], sizes = [1, 32, 128], strides = [1, 1, 1]} : vector<19x32x128xf32> to vector<1x32x128xf32>
    %65 = vector.shape_cast %64 : vector<1x32x128xf32> to vector<32x128xf32>
    %66 = arith.maximumf %63, %65 : vector<32x128xf32>
    %67 = vector.extract_strided_slice %13 {offsets = [18, 0, 0], sizes = [1, 32, 128], strides = [1, 1, 1]} : vector<19x32x128xf32> to vector<1x32x128xf32>
    %68 = vector.shape_cast %67 : vector<1x32x128xf32> to vector<32x128xf32>
    %69 = arith.maximumf %66, %68 : vector<32x128xf32>
    %cst_12 = arith.constant 0.000000e+00 : f32
    %70 = vector.broadcast %cst_12 : f32 to vector<32x128xf32>
    %cst_13 = arith.constant 0.000000e+00 : f32
    %71 = vector.broadcast %cst_13 : f32 to vector<32x128xf32>
    %72 = vector.extract_strided_slice %13 {offsets = [0, 0, 0], sizes = [1, 32, 128], strides = [1, 1, 1]} : vector<19x32x128xf32> to vector<1x32x128xf32>
    %73 = vector.shape_cast %72 : vector<1x32x128xf32> to vector<32x128xf32>
    %74 = arith.subf %73, %69 : vector<32x128xf32>
    %75 = math.exp %74 : vector<32x128xf32>
    %76 = arith.addf %70, %75 : vector<32x128xf32>
    %c0_i32 = arith.constant 0 : i32
    %77 = vector.broadcast %c0_i32 : i32 to vector<32x128xi32>
    %78 = arith.cmpi eq, %5, %77 : vector<32x128xi32>
    %79 = arith.select %78, %73, %71 : vector<32x128xi1>, vector<32x128xf32>
    %80 = vector.extract_strided_slice %13 {offsets = [1, 0, 0], sizes = [1, 32, 128], strides = [1, 1, 1]} : vector<19x32x128xf32> to vector<1x32x128xf32>
    %81 = vector.shape_cast %80 : vector<1x32x128xf32> to vector<32x128xf32>
    %82 = arith.subf %81, %69 : vector<32x128xf32>
    %83 = math.exp %82 : vector<32x128xf32>
    %84 = arith.addf %76, %83 : vector<32x128xf32>
    %c1_i32 = arith.constant 1 : i32
    %85 = vector.broadcast %c1_i32 : i32 to vector<32x128xi32>
    %86 = arith.cmpi eq, %5, %85 : vector<32x128xi32>
    %87 = arith.select %86, %81, %79 : vector<32x128xi1>, vector<32x128xf32>
    %88 = vector.extract_strided_slice %13 {offsets = [2, 0, 0], sizes = [1, 32, 128], strides = [1, 1, 1]} : vector<19x32x128xf32> to vector<1x32x128xf32>
    %89 = vector.shape_cast %88 : vector<1x32x128xf32> to vector<32x128xf32>
    %90 = arith.subf %89, %69 : vector<32x128xf32>
    %91 = math.exp %90 : vector<32x128xf32>
    %92 = arith.addf %84, %91 : vector<32x128xf32>
    %c2_i32 = arith.constant 2 : i32
    %93 = vector.broadcast %c2_i32 : i32 to vector<32x128xi32>
    %94 = arith.cmpi eq, %5, %93 : vector<32x128xi32>
    %95 = arith.select %94, %89, %87 : vector<32x128xi1>, vector<32x128xf32>
    %96 = vector.extract_strided_slice %13 {offsets = [3, 0, 0], sizes = [1, 32, 128], strides = [1, 1, 1]} : vector<19x32x128xf32> to vector<1x32x128xf32>
    %97 = vector.shape_cast %96 : vector<1x32x128xf32> to vector<32x128xf32>
    %98 = arith.subf %97, %69 : vector<32x128xf32>
    %99 = math.exp %98 : vector<32x128xf32>
    %100 = arith.addf %92, %99 : vector<32x128xf32>
    %c3_i32 = arith.constant 3 : i32
    %101 = vector.broadcast %c3_i32 : i32 to vector<32x128xi32>
    %102 = arith.cmpi eq, %5, %101 : vector<32x128xi32>
    %103 = arith.select %102, %97, %95 : vector<32x128xi1>, vector<32x128xf32>
    %104 = vector.extract_strided_slice %13 {offsets = [4, 0, 0], sizes = [1, 32, 128], strides = [1, 1, 1]} : vector<19x32x128xf32> to vector<1x32x128xf32>
    %105 = vector.shape_cast %104 : vector<1x32x128xf32> to vector<32x128xf32>
    %106 = arith.subf %105, %69 : vector<32x128xf32>
    %107 = math.exp %106 : vector<32x128xf32>
    %108 = arith.addf %100, %107 : vector<32x128xf32>
    %c4_i32 = arith.constant 4 : i32
    %109 = vector.broadcast %c4_i32 : i32 to vector<32x128xi32>
    %110 = arith.cmpi eq, %5, %109 : vector<32x128xi32>
    %111 = arith.select %110, %105, %103 : vector<32x128xi1>, vector<32x128xf32>
    %112 = vector.extract_strided_slice %13 {offsets = [5, 0, 0], sizes = [1, 32, 128], strides = [1, 1, 1]} : vector<19x32x128xf32> to vector<1x32x128xf32>
    %113 = vector.shape_cast %112 : vector<1x32x128xf32> to vector<32x128xf32>
    %114 = arith.subf %113, %69 : vector<32x128xf32>
    %115 = math.exp %114 : vector<32x128xf32>
    %116 = arith.addf %108, %115 : vector<32x128xf32>
    %c5_i32 = arith.constant 5 : i32
    %117 = vector.broadcast %c5_i32 : i32 to vector<32x128xi32>
    %118 = arith.cmpi eq, %5, %117 : vector<32x128xi32>
    %119 = arith.select %118, %113, %111 : vector<32x128xi1>, vector<32x128xf32>
    %120 = vector.extract_strided_slice %13 {offsets = [6, 0, 0], sizes = [1, 32, 128], strides = [1, 1, 1]} : vector<19x32x128xf32> to vector<1x32x128xf32>
    %121 = vector.shape_cast %120 : vector<1x32x128xf32> to vector<32x128xf32>
    %122 = arith.subf %121, %69 : vector<32x128xf32>
    %123 = math.exp %122 : vector<32x128xf32>
    %124 = arith.addf %116, %123 : vector<32x128xf32>
    %c6_i32 = arith.constant 6 : i32
    %125 = vector.broadcast %c6_i32 : i32 to vector<32x128xi32>
    %126 = arith.cmpi eq, %5, %125 : vector<32x128xi32>
    %127 = arith.select %126, %121, %119 : vector<32x128xi1>, vector<32x128xf32>
    %128 = vector.extract_strided_slice %13 {offsets = [7, 0, 0], sizes = [1, 32, 128], strides = [1, 1, 1]} : vector<19x32x128xf32> to vector<1x32x128xf32>
    %129 = vector.shape_cast %128 : vector<1x32x128xf32> to vector<32x128xf32>
    %130 = arith.subf %129, %69 : vector<32x128xf32>
    %131 = math.exp %130 : vector<32x128xf32>
    %132 = arith.addf %124, %131 : vector<32x128xf32>
    %c7_i32 = arith.constant 7 : i32
    %133 = vector.broadcast %c7_i32 : i32 to vector<32x128xi32>
    %134 = arith.cmpi eq, %5, %133 : vector<32x128xi32>
    %135 = arith.select %134, %129, %127 : vector<32x128xi1>, vector<32x128xf32>
    %136 = vector.extract_strided_slice %13 {offsets = [8, 0, 0], sizes = [1, 32, 128], strides = [1, 1, 1]} : vector<19x32x128xf32> to vector<1x32x128xf32>
    %137 = vector.shape_cast %136 : vector<1x32x128xf32> to vector<32x128xf32>
    %138 = arith.subf %137, %69 : vector<32x128xf32>
    %139 = math.exp %138 : vector<32x128xf32>
    %140 = arith.addf %132, %139 : vector<32x128xf32>
    %c8_i32 = arith.constant 8 : i32
    %141 = vector.broadcast %c8_i32 : i32 to vector<32x128xi32>
    %142 = arith.cmpi eq, %5, %141 : vector<32x128xi32>
    %143 = arith.select %142, %137, %135 : vector<32x128xi1>, vector<32x128xf32>
    %144 = vector.extract_strided_slice %13 {offsets = [9, 0, 0], sizes = [1, 32, 128], strides = [1, 1, 1]} : vector<19x32x128xf32> to vector<1x32x128xf32>
    %145 = vector.shape_cast %144 : vector<1x32x128xf32> to vector<32x128xf32>
    %146 = arith.subf %145, %69 : vector<32x128xf32>
    %147 = math.exp %146 : vector<32x128xf32>
    %148 = arith.addf %140, %147 : vector<32x128xf32>
    %c9_i32 = arith.constant 9 : i32
    %149 = vector.broadcast %c9_i32 : i32 to vector<32x128xi32>
    %150 = arith.cmpi eq, %5, %149 : vector<32x128xi32>
    %151 = arith.select %150, %145, %143 : vector<32x128xi1>, vector<32x128xf32>
    %152 = vector.extract_strided_slice %13 {offsets = [10, 0, 0], sizes = [1, 32, 128], strides = [1, 1, 1]} : vector<19x32x128xf32> to vector<1x32x128xf32>
    %153 = vector.shape_cast %152 : vector<1x32x128xf32> to vector<32x128xf32>
    %154 = arith.subf %153, %69 : vector<32x128xf32>
    %155 = math.exp %154 : vector<32x128xf32>
    %156 = arith.addf %148, %155 : vector<32x128xf32>
    %c10_i32 = arith.constant 10 : i32
    %157 = vector.broadcast %c10_i32 : i32 to vector<32x128xi32>
    %158 = arith.cmpi eq, %5, %157 : vector<32x128xi32>
    %159 = arith.select %158, %153, %151 : vector<32x128xi1>, vector<32x128xf32>
    %160 = vector.extract_strided_slice %13 {offsets = [11, 0, 0], sizes = [1, 32, 128], strides = [1, 1, 1]} : vector<19x32x128xf32> to vector<1x32x128xf32>
    %161 = vector.shape_cast %160 : vector<1x32x128xf32> to vector<32x128xf32>
    %162 = arith.subf %161, %69 : vector<32x128xf32>
    %163 = math.exp %162 : vector<32x128xf32>
    %164 = arith.addf %156, %163 : vector<32x128xf32>
    %c11_i32 = arith.constant 11 : i32
    %165 = vector.broadcast %c11_i32 : i32 to vector<32x128xi32>
    %166 = arith.cmpi eq, %5, %165 : vector<32x128xi32>
    %167 = arith.select %166, %161, %159 : vector<32x128xi1>, vector<32x128xf32>
    %168 = vector.extract_strided_slice %13 {offsets = [12, 0, 0], sizes = [1, 32, 128], strides = [1, 1, 1]} : vector<19x32x128xf32> to vector<1x32x128xf32>
    %169 = vector.shape_cast %168 : vector<1x32x128xf32> to vector<32x128xf32>
    %170 = arith.subf %169, %69 : vector<32x128xf32>
    %171 = math.exp %170 : vector<32x128xf32>
    %172 = arith.addf %164, %171 : vector<32x128xf32>
    %c12_i32 = arith.constant 12 : i32
    %173 = vector.broadcast %c12_i32 : i32 to vector<32x128xi32>
    %174 = arith.cmpi eq, %5, %173 : vector<32x128xi32>
    %175 = arith.select %174, %169, %167 : vector<32x128xi1>, vector<32x128xf32>
    %176 = vector.extract_strided_slice %13 {offsets = [13, 0, 0], sizes = [1, 32, 128], strides = [1, 1, 1]} : vector<19x32x128xf32> to vector<1x32x128xf32>
    %177 = vector.shape_cast %176 : vector<1x32x128xf32> to vector<32x128xf32>
    %178 = arith.subf %177, %69 : vector<32x128xf32>
    %179 = math.exp %178 : vector<32x128xf32>
    %180 = arith.addf %172, %179 : vector<32x128xf32>
    %c13_i32 = arith.constant 13 : i32
    %181 = vector.broadcast %c13_i32 : i32 to vector<32x128xi32>
    %182 = arith.cmpi eq, %5, %181 : vector<32x128xi32>
    %183 = arith.select %182, %177, %175 : vector<32x128xi1>, vector<32x128xf32>
    %184 = vector.extract_strided_slice %13 {offsets = [14, 0, 0], sizes = [1, 32, 128], strides = [1, 1, 1]} : vector<19x32x128xf32> to vector<1x32x128xf32>
    %185 = vector.shape_cast %184 : vector<1x32x128xf32> to vector<32x128xf32>
    %186 = arith.subf %185, %69 : vector<32x128xf32>
    %187 = math.exp %186 : vector<32x128xf32>
    %188 = arith.addf %180, %187 : vector<32x128xf32>
    %c14_i32 = arith.constant 14 : i32
    %189 = vector.broadcast %c14_i32 : i32 to vector<32x128xi32>
    %190 = arith.cmpi eq, %5, %189 : vector<32x128xi32>
    %191 = arith.select %190, %185, %183 : vector<32x128xi1>, vector<32x128xf32>
    %192 = vector.extract_strided_slice %13 {offsets = [15, 0, 0], sizes = [1, 32, 128], strides = [1, 1, 1]} : vector<19x32x128xf32> to vector<1x32x128xf32>
    %193 = vector.shape_cast %192 : vector<1x32x128xf32> to vector<32x128xf32>
    %194 = arith.subf %193, %69 : vector<32x128xf32>
    %195 = math.exp %194 : vector<32x128xf32>
    %196 = arith.addf %188, %195 : vector<32x128xf32>
    %c15_i32 = arith.constant 15 : i32
    %197 = vector.broadcast %c15_i32 : i32 to vector<32x128xi32>
    %198 = arith.cmpi eq, %5, %197 : vector<32x128xi32>
    %199 = arith.select %198, %193, %191 : vector<32x128xi1>, vector<32x128xf32>
    %200 = vector.extract_strided_slice %13 {offsets = [16, 0, 0], sizes = [1, 32, 128], strides = [1, 1, 1]} : vector<19x32x128xf32> to vector<1x32x128xf32>
    %201 = vector.shape_cast %200 : vector<1x32x128xf32> to vector<32x128xf32>
    %202 = arith.subf %201, %69 : vector<32x128xf32>
    %203 = math.exp %202 : vector<32x128xf32>
    %204 = arith.addf %196, %203 : vector<32x128xf32>
    %c16_i32 = arith.constant 16 : i32
    %205 = vector.broadcast %c16_i32 : i32 to vector<32x128xi32>
    %206 = arith.cmpi eq, %5, %205 : vector<32x128xi32>
    %207 = arith.select %206, %201, %199 : vector<32x128xi1>, vector<32x128xf32>
    %208 = vector.extract_strided_slice %13 {offsets = [17, 0, 0], sizes = [1, 32, 128], strides = [1, 1, 1]} : vector<19x32x128xf32> to vector<1x32x128xf32>
    %209 = vector.shape_cast %208 : vector<1x32x128xf32> to vector<32x128xf32>
    %210 = arith.subf %209, %69 : vector<32x128xf32>
    %211 = math.exp %210 : vector<32x128xf32>
    %212 = arith.addf %204, %211 : vector<32x128xf32>
    %c17_i32 = arith.constant 17 : i32
    %213 = vector.broadcast %c17_i32 : i32 to vector<32x128xi32>
    %214 = arith.cmpi eq, %5, %213 : vector<32x128xi32>
    %215 = arith.select %214, %209, %207 : vector<32x128xi1>, vector<32x128xf32>
    %216 = vector.extract_strided_slice %13 {offsets = [18, 0, 0], sizes = [1, 32, 128], strides = [1, 1, 1]} : vector<19x32x128xf32> to vector<1x32x128xf32>
    %217 = vector.shape_cast %216 : vector<1x32x128xf32> to vector<32x128xf32>
    %218 = arith.subf %217, %69 : vector<32x128xf32>
    %219 = math.exp %218 : vector<32x128xf32>
    %220 = arith.addf %212, %219 : vector<32x128xf32>
    %c18_i32 = arith.constant 18 : i32
    %221 = vector.broadcast %c18_i32 : i32 to vector<32x128xi32>
    %222 = arith.cmpi eq, %5, %221 : vector<32x128xi32>
    %223 = arith.select %222, %217, %215 : vector<32x128xi1>, vector<32x128xf32>
    %224 = arith.subf %223, %69 : vector<32x128xf32>
    %225 = math.log %220 : vector<32x128xf32>
    %226 = arith.subf %224, %225 : vector<32x128xf32>
    %c0_14 = arith.constant 0 : index
    %c0_15 = arith.constant 0 : index
    %c0_16 = arith.constant 0 : index
    %c0_17 = arith.constant 0 : index
    %227 = vector.load %arg7[%c0_14, %c0_15, %c0_16, %c0_17] : memref<1x1x32x128xf32, #tpu.memory_space<vmem>>, vector<1x1x32x128xf32>
    %228 = vector.shape_cast %227 : vector<1x1x32x128xf32> to vector<32x128xf32>
    %229 = vector.shape_cast %226 : vector<32x128xf32> to vector<1x1x32x128xf32>
    tpu.vector_store %arg7[%c0_14, %c0_15, %c0_16, %c0_17], %229 {strides = array<i32>} : memref<1x1x32x128xf32, #tpu.memory_space<vmem>>, vector<1x1x32x128xf32>,
    return
  }
  func.func @transform_0(%arg0: i32, %arg1: i32, %arg2: i32) -> (i32, i32, i32, i32, i32) {
    %c0_i32 = arith.constant 0 : i32
    %c0_i32_0 = arith.constant 0 : i32
    %c0_i32_1 = arith.constant 0 : i32
    %c0_i32_2 = arith.constant 0 : i32
    return %arg0, %arg1, %c0_i32, %c0_i32_0, %c0_i32_1 : i32, i32, i32, i32, i32
  }
  func.func @transform_1(%arg0: i32, %arg1: i32, %arg2: i32) -> (i32, i32, i32) {
    %c0_i32 = arith.constant 0 : i32
    %c0_i32_0 = arith.constant 0 : i32
    return %arg1, %arg2, %c0_i32 : i32, i32, i32
  }
  func.func @transform_2(%arg0: i32, %arg1: i32, %arg2: i32) -> (i32, i32) {
    %c0_i32 = arith.constant 0 : i32
    %c0_i32_0 = arith.constant 0 : i32
    return %arg2, %c0_i32 : i32, i32
  }
  func.func @transform_3(%arg0: i32, %arg1: i32, %arg2: i32) -> (i32, i32) {
    %c0_i32 = arith.constant 0 : i32
    %c0_i32_0 = arith.constant 0 : i32
    %c0_i32_1 = arith.constant 0 : i32
    return %c0_i32, %c0_i32_0 : i32, i32
  }
  func.func @transform_4(%arg0: i32, %arg1: i32, %arg2: i32) -> (i32, i32, i32, i32) {
    %c0_i32 = arith.constant 0 : i32
    %c0_i32_0 = arith.constant 0 : i32
    return %arg0, %arg1, %arg2, %c0_i32 : i32, i32, i32, i32
  }
}

</mosaic_0001>

<llo_original>
// kernel: tpu_custom_call.1
$region0: #{tpu_custom_call.1}
  #allocation0 [shape = 'u32[]', space=smem, size = 0x4, offset = 0x4, fixed_abs, tag = 'smem constant byte address 0x4 - core index']
  #allocation1 [shape = 'u32[144,128]{1,0:T(1,128)}', space=vmem, size = 0x12000, scoped, tag = 'internal scratch']
  %s0 = inlined_call_operand.vmem [shape: bf16[2,2,19,16,16], index: 0, kind: input, shape index: {}]
  %s1 = inlined_call_operand.vmem [shape: s32[2,32,128], index: 1, kind: input, shape index: {}]
  %s2 = inlined_call_operand.vmem [shape: bf16[32,16], index: 2, kind: input, shape index: {}]
  %s3 = inlined_call_operand.vmem [shape: bf16[16,128], index: 3, kind: input, shape index: {}]
  %s4 = inlined_call_operand.hbm [shape: f32[2,2,32,128], index: 4, kind: output, shape index: {}]
  %s5 = sld [smem:[#allocation0]]
  $region49: #{tpu_custom_call.1} parent=0
    _
  %s7 = ssub.s32 1, %s5
  %s8 = scalar_select 0, %s7, %s5
  $region1: #{tpu_custom_call.1} parent=0
    #allocation2 [shape = 'u8[32768]{0}', space=vmem, size = 0x8000, scoped, tag = 'output window, operand 0']
    #allocation3 [shape = 's32[2]{0}', space=sflag, size = 0x8, scoped, tag = 'scoped memory for tpu_custom_call.1']
    %9 = vsyncpa [#allocation3], 0
    %s10 = scalar_lea.sflag [#allocation3], 1
    %11 = vsyncpa %s10, 0
    loop: start=0, step=1, limit=6
    $region2: #{tpu_custom_call.1} parent=1 // loop_pre_header
      _
    $region3: #{tpu_custom_call.1} parent=1 // loop_header
      %s13 = sphi 0, %s17
      %p14 = scmp.ge.s32.totalorder %s13, 6
      %s20 = sphi 0, %s39
      %s21 = sphi 0, %s35
      %s22 = sphi 0, %s31
      %s23 = sphi 0, %s20
      %s24 = sphi 0, %s21
      %s25 = sphi 0, %s22
      %s26 = sphi 0, %s23
      %s27 = sphi 0, %s24
      %s28 = sphi 0, %s25
      %s44 = sphi 0, %s46
      %s47 = sphi 0, %s44
      %s48 = sphi 0, %s47
      %s64 = sphi 0, %s48
      %s72 = sphi 0, %s74
      %s75 = sphi 0, %s72
      %s76 = sphi 0, %s75
      %s92 = sphi 0, %s76
      %s98 = sphi 0, %s100
      %s101 = sphi 0, %s98
      %s102 = sphi 0, %s101
      %s118 = sphi 0, %s102
      %s122 = sphi 0, %s122
      %s124 = sphi 0, %s122
      %s125 = sphi 0, %s124
      %s139 = sphi 0, %s125
      %s149 = sphi 0, %s151
      %s152 = sphi 0, %s149
      %s153 = sphi 0, %s152
      %s169 = sphi 0, %s153
    $region4: #{tpu_custom_call.1} parent=1 // loop_header_branch
      %16 = sbr.rel (%p14) target = $region8
    $region5: #{tpu_custom_call.1} parent=1 // loop_body
      %s18 = ssub.s32 %s13, 1
      %s19 = ssub.s32 %s13, 2
      %s29 = sadd.s32 1, %s22
      %p30 = scmp.ge.s32.totalorder %s29, 1
      %s31 = scalar_select %p30, 0, %s29
      %s32 = sadd.s32 1, %s21
      %s33 = scalar_select %p30, %s32, %s21
      %p34 = scmp.ge.s32.totalorder %s33, 2
      %s35 = scalar_select %p34, 0, %s33
      %s36 = sadd.s32 1, %s20
      %s37 = scalar_select %p34, %s36, %s20
      %p38 = scmp.ge.s32.totalorder %s37, 2
      %s39 = scalar_select %p38, 0, %s37
      %s40 = ssub.s32 %s20, %s39
      %s41 = ssub.s32 %s21, %s35
      %s42 = sor.u32 %s40, %s41
      %p43 = scmp.eq.s32.totalorder %s42, 0
      %s45 = sadd.s32 %s44, 1
      %s46 = scalar_select %p43, %s44, %s45
      %p49 = pneg %p43
      %p50 = scmp.eq.s32.totalorder %s13, 3
      %p51 = por %p49, %p50
      %p52 = scmp.ne.s32.totalorder %s44, %s47
      %p53 = scmp.eq.s32.totalorder %s13, 0
      %p54 = por %p52, %p53
      %p55 = scmp.ne.s32.totalorder %s44, %s47
      %p56 = scmp.eq.s32.totalorder %s18, 3
      %p57 = por %p55, %p56
      %p58 = scmp.ne.s32.totalorder %s47, %s48
      %p59 = scmp.eq.s32.totalorder %s18, 0
      %p60 = por %p58, %p59
      %p61 = scmp.ne.s32.totalorder %s47, %s48
      %p62 = scmp.eq.s32.totalorder %s19, 3
      %p63 = por %p61, %p62
      %p65 = scmp.ne.s32.totalorder %s48, %s64
      %p66 = scmp.eq.s32.totalorder %s19, 0
      %p67 = por %p65, %p66
      %s68 = ssub.s32 %s21, %s35
      %s69 = ssub.s32 %s22, %s31
      %s70 = sor.u32 %s68, %s69
      %p71 = scmp.eq.s32.totalorder %s70, 0
      %s73 = sadd.s32 %s72, 1
      %s74 = scalar_select %p71, %s72, %s73
      %p77 = pneg %p71
      %p78 = scmp.eq.s32.totalorder %s13, 3
      %p79 = por %p77, %p78
      %p80 = scmp.ne.s32.totalorder %s72, %s75
      %p81 = scmp.eq.s32.totalorder %s13, 0
      %p82 = por %p80, %p81
      %p83 = scmp.ne.s32.totalorder %s72, %s75
      %p84 = scmp.eq.s32.totalorder %s18, 3
      %p85 = por %p83, %p84
      %p86 = scmp.ne.s32.totalorder %s75, %s76
      %p87 = scmp.eq.s32.totalorder %s18, 0
      %p88 = por %p86, %p87
      %p89 = scmp.ne.s32.totalorder %s75, %s76
      %p90 = scmp.eq.s32.totalorder %s19, 3
      %p91 = por %p89, %p90
      %p93 = scmp.ne.s32.totalorder %s76, %s92
      %p94 = scmp.eq.s32.totalorder %s19, 0
      %p95 = por %p93, %p94
      %s96 = ssub.s32 %s22, %s31
      %p97 = scmp.eq.s32.totalorder %s96, 0
      %s99 = sadd.s32 %s98, 1
      %s100 = scalar_select %p97, %s98, %s99
      %p103 = pneg %p97
      %p104 = scmp.eq.s32.totalorder %s13, 3
      %p105 = por %p103, %p104
      %p106 = scmp.ne.s32.totalorder %s98, %s101
      %p107 = scmp.eq.s32.totalorder %s13, 0
      %p108 = por %p106, %p107
      %p109 = scmp.ne.s32.totalorder %s98, %s101
      %p110 = scmp.eq.s32.totalorder %s18, 3
      %p111 = por %p109, %p110
      %p112 = scmp.ne.s32.totalorder %s101, %s102
      %p113 = scmp.eq.s32.totalorder %s18, 0
      %p114 = por %p112, %p113
      %p115 = scmp.ne.s32.totalorder %s101, %s102
      %p116 = scmp.eq.s32.totalorder %s19, 3
      %p117 = por %p115, %p116
      %p119 = scmp.ne.s32.totalorder %s102, %s118
      %p120 = scmp.eq.s32.totalorder %s19, 0
      %p121 = por %p119, %p120
      %s123 = sadd.s32 %s122, 1
      %p126 = scmp.eq.s32.totalorder %s13, 3
      %p127 = scmp.ne.s32.totalorder %s122, %s124
      %p128 = scmp.eq.s32.totalorder %s13, 0
      %p129 = por %p127, %p128
      %p130 = scmp.ne.s32.totalorder %s122, %s124
      %p131 = scmp.eq.s32.totalorder %s18, 3
      %p132 = por %p130, %p131
      %p133 = scmp.ne.s32.totalorder %s124, %s125
      %p134 = scmp.eq.s32.totalorder %s18, 0
      %p135 = por %p133, %p134
      %p136 = scmp.ne.s32.totalorder %s124, %s125
      %p137 = scmp.eq.s32.totalorder %s19, 3
      %p138 = por %p136, %p137
      %p140 = scmp.ne.s32.totalorder %s125, %s139
      %p141 = scmp.eq.s32.totalorder %s19, 0
      %p142 = por %p140, %p141
      %s143 = ssub.s32 %s20, %s39
      %s144 = ssub.s32 %s21, %s35
      %s145 = sor.u32 %s143, %s144
      %s146 = ssub.s32 %s22, %s31
      %s147 = sor.u32 %s145, %s146
      %p148 = scmp.eq.s32.totalorder %s147, 0
      %s150 = sadd.s32 %s149, 1
      %s151 = scalar_select %p148, %s149, %s150
      %p154 = pneg %p148
      %p155 = scmp.eq.s32.totalorder %s13, 3
      %p156 = por %p154, %p155
      %p157 = scmp.ne.s32.totalorder %s149, %s152
      %p158 = scmp.eq.s32.totalorder %s13, 0
      %p159 = por %p157, %p158
      %p160 = scmp.ne.s32.totalorder %s149, %s152
      %p161 = scmp.eq.s32.totalorder %s18, 3
      %p162 = por %p160, %p161
      %p163 = scmp.ne.s32.totalorder %s152, %s153
      %p164 = scmp.eq.s32.totalorder %s18, 0
      %p165 = por %p163, %p164
      %p166 = scmp.ne.s32.totalorder %s152, %s153
      %p167 = scmp.eq.s32.totalorder %s19, 3
      %p168 = por %p166, %p167
      %p170 = scmp.ne.s32.totalorder %s153, %s169
      %p171 = scmp.eq.s32.totalorder %s19, 0
      %p172 = por %p170, %p171
      %p173 = scmp.le.s32.totalorder 1, %s13
      %p174 = scmp.lt.s32.totalorder %s13, 5
      %p175 = pnand %p173, %p174
      %p176 = pneg %p175
      // Predicated region
      $region9: #{tpu_custom_call.1} parent=5 // pred_check
        _
      $region10: #{tpu_custom_call.1} parent=5 // pred_check_branch
        %178 = sbr.rel (%p175) target = $region12
      $region11: #{tpu_custom_call.1} parent=5 // pred_region
        %s179 = ssub.s32 %s13, 1
        // Predicated region
        $region13: #{tpu_custom_call.1} parent=11 // pred_check
          %p180 = pneg %p114
        $region14: #{tpu_custom_call.1} parent=11 // pred_check_branch
          %182 = sbr.rel (%p180) target = $region16
        $region15: #{tpu_custom_call.1} parent=11 // pred_region
          %s183 = smul.u32 4, %s25
          %p184 = scmp.lt.s32.totalorder %s183, 3
          %s185 = scalar_select %p184, %s183, 3
          %s186 = smul.addr %s185, 4
          %s187 = scalar_lea.vmem %s2, %s186
          %s188 = smul.u32 4, %s25
        $region16: #{tpu_custom_call.1} parent=11 // pred_fallthru
          _
        // Predicated region
        $region17: #{tpu_custom_call.1} parent=11 // pred_check
          %p189 = pneg %p135
        $region18: #{tpu_custom_call.1} parent=11 // pred_check_branch
          %191 = sbr.rel (%p189) target = $region20
        $region19: #{tpu_custom_call.1} parent=11 // pred_region
          _
        $region20: #{tpu_custom_call.1} parent=11 // pred_fallthru
          _
      $region12: #{tpu_custom_call.1} parent=5 // pred_fallthru
        _
      %p192 = scmp.lt.s32.totalorder %s13, 4
      // Predicated region
      $region21: #{tpu_custom_call.1} parent=5 // pred_check
        %p193 = pneg %p192
      $region22: #{tpu_custom_call.1} parent=5 // pred_check_branch
        %195 = sbr.rel (%p193) target = $region24
      $region23: #{tpu_custom_call.1} parent=5 // pred_region
        // Predicated region
        $region25: #{tpu_custom_call.1} parent=23 // pred_check
          %p196 = pneg %p54
        $region26: #{tpu_custom_call.1} parent=23 // pred_check_branch
          %198 = sbr.rel (%p196) target = $region28
        $region27: #{tpu_custom_call.1} parent=23 // pred_region
          %p199 = scmp.lt.s32.totalorder %s20, 1
          %s200 = scalar_select %p199, %s20, 1
          %p201 = scmp.lt.s32.totalorder %s21, 1
          %s202 = scalar_select %p201, %s21, 1
          %s203 = smul.addr %s202, 38
          %s204 = smul.addr %s200, 76
          %s205 = sadd.s32 %s203, %s204
          %s206 = smul.addr %s205, 4
          %s207 = scalar_lea.vmem %s0, %s206
        $region28: #{tpu_custom_call.1} parent=23 // pred_fallthru
          _
        // Predicated region
        $region29: #{tpu_custom_call.1} parent=23 // pred_check
          %p208 = pneg %p82
        $region30: #{tpu_custom_call.1} parent=23 // pred_check_branch
          %210 = sbr.rel (%p208) target = $region32
        $region31: #{tpu_custom_call.1} parent=23 // pred_region
          %s211 = smul.u32 4, %s22
          %p212 = scmp.lt.s32.totalorder %s21, 1
          %s213 = scalar_select %p212, %s21, 1
          %p214 = scmp.lt.s32.totalorder %s211, 3
          %s215 = scalar_select %p214, %s211, 3
          %s216 = smul.addr %s213, 4
          %s217 = sadd.s32 %s215, %s216
          %s218 = smul.addr %s217, 8
          %s219 = scalar_lea.vmem %s1, %s218
          %s220 = smul.u32 4, %s22
        $region32: #{tpu_custom_call.1} parent=23 // pred_fallthru
          _
      $region24: #{tpu_custom_call.1} parent=5 // pred_fallthru
        _
      %p221 = scmp.le.s32.totalorder 1, %s13
      %p222 = scmp.lt.s32.totalorder %s13, 5
      %p223 = pnand %p221, %p222
      %p224 = pneg %p223
      // Predicated region
      $region33: #{tpu_custom_call.1} parent=5 // pred_check
        _
      $region34: #{tpu_custom_call.1} parent=5 // pred_check_branch
        %226 = sbr.rel (%p223) target = $region36
      $region35: #{tpu_custom_call.1} parent=5 // pred_region
        %s227 = ssub.s32 %s13, 1
        %p228 = scmp.lt.s32.totalorder %s23, 1
        %s229 = scalar_select %p228, %s23, 1
        %p230 = scmp.lt.s32.totalorder %s24, 1
        %s231 = scalar_select %p230, %s24, 1
        %s232 = smul.addr %s231, 38
        %s233 = smul.addr %s229, 76
        %s234 = sadd.s32 %s232, %s233
        %s235 = smul.addr %s234, 4
        %s236 = scalar_lea.vmem %s0, %s235
        %p237 = pneg %p60
        %p238 = pneg %p57
        %s239 = smul.u32 4, %s25
        %p240 = scmp.lt.s32.totalorder %s24, 1
        %s241 = scalar_select %p240, %s24, 1
        %p242 = scmp.lt.s32.totalorder %s239, 3
        %s243 = scalar_select %p242, %s239, 3
        %s244 = smul.addr %s241, 4
        %s245 = sadd.s32 %s243, %s244
        %s246 = smul.addr %s245, 8
        %s247 = scalar_lea.vmem %s1, %s246
        %p248 = pneg %p88
        %p249 = pneg %p85
        %s250 = smul.u32 4, %s25
        %p251 = scmp.lt.s32.totalorder %s250, 3
        %s252 = scalar_select %p251, %s250, 3
        %s253 = smul.addr %s252, 4
        %s254 = scalar_lea.vmem %s2, %s253
        %p255 = pneg %p114
        %p256 = pneg %p111
        %p257 = pneg %p135
        %p258 = pneg %p132
        %p259 = pneg %p165
        %p260 = pneg %p162
        %s261 = sand.u32 %s152, 1
        %s262 = scalar_lea.sflag [#allocation3], %s261
        %s263 = sand.u32 %s152, 1
        %s264 = smul.addr %s263, 32
        %s265 = scalar_lea.vmem [#allocation2], %s264
        %p266 = scmp.lt.s32.totalorder %s23, 1
        %s267 = scalar_select %p266, %s23, 1
        %p268 = scmp.lt.s32.totalorder %s24, 1
        %s269 = scalar_select %p268, %s24, 1
        %s270 = smul.addr %s269, 38
        %s271 = smul.addr %s267, 76
        %s272 = sadd.s32 %s270, %s271
        %s273 = smul.addr %s272, 4
        %s274 = scalar_lea.vmem %s0, %s273
        %s275 = smul.u32 4, %s25
        %p276 = scmp.lt.s32.totalorder %s24, 1
        %s277 = scalar_select %p276, %s24, 1
        %p278 = scmp.lt.s32.totalorder %s275, 3
        %s279 = scalar_select %p278, %s275, 3
        %s280 = smul.addr %s277, 4
        %s281 = sadd.s32 %s279, %s280
        %s282 = smul.addr %s281, 8
        %s283 = scalar_lea.vmem %s1, %s282
        %s284 = smul.u32 4, %s25
        %s285 = smul.u32 4, %s25
        %p286 = scmp.lt.s32.totalorder %s285, 3
        %s287 = scalar_select %p286, %s285, 3
        %s288 = smul.addr %s287, 4
        %s289 = scalar_lea.vmem %s2, %s288
        %s290 = smul.u32 4, %s25
        %s291 = smul.u32 4, %s25
        %v293 = vld [vmem:[%s274] sm:$0xf]
        %v294 = vld [vmem:[%s274 + $0x4] sm:$0xf]
        %v295 = vld [vmem:[%s274 + $0x8] sm:$0xf]
        %v296 = vld [vmem:[%s274 + $0xc] sm:$0xf]
        %v297 = vld [vmem:[%s274 + $0x10] sm:$0xf]
        %v298 = vld [vmem:[%s274 + $0x14] sm:$0xf]
        %v299 = vld [vmem:[%s274 + $0x18] sm:$0xf]
        %v300 = vld [vmem:[%s274 + $0x1c] sm:$0xf]
        %v301 = vld [vmem:[%s274 + $0x20] sm:$0xf]
        %v302 = vld [vmem:[%s274 + $0x24] sm:$0xf]
        %v303 = vld [vmem:[%s274 + $0x28] sm:$0xf]
        %v304 = vld [vmem:[%s274 + $0x2c] sm:$0xf]
        %v305 = vld [vmem:[%s274 + $0x30] sm:$0xf]
        %v306 = vld [vmem:[%s274 + $0x34] sm:$0xf]
        %v307 = vld [vmem:[%s274 + $0x38] sm:$0xf]
        %v308 = vld [vmem:[%s274 + $0x3c] sm:$0xf]
        %v309 = vld [vmem:[%s274 + $0x40] sm:$0xf]
        %v310 = vld [vmem:[%s274 + $0x44] sm:$0xf]
        %v311 = vld [vmem:[%s274 + $0x48] sm:$0xf]
        %v312 = vld [vmem:[%s274 + $0x4c] sm:$0xf]
        %v313 = vld [vmem:[%s274 + $0x50] sm:$0xf]
        %v314 = vld [vmem:[%s274 + $0x54] sm:$0xf]
        %v315 = vld [vmem:[%s274 + $0x58] sm:$0xf]
        %v316 = vld [vmem:[%s274 + $0x5c] sm:$0xf]
        %v317 = vld [vmem:[%s274 + $0x60] sm:$0xf]
        %v318 = vld [vmem:[%s274 + $0x64] sm:$0xf]
        %v319 = vld [vmem:[%s274 + $0x68] sm:$0xf]
        %v320 = vld [vmem:[%s274 + $0x6c] sm:$0xf]
        %v321 = vld [vmem:[%s274 + $0x70] sm:$0xf]
        %v322 = vld [vmem:[%s274 + $0x74] sm:$0xf]
        %v323 = vld [vmem:[%s274 + $0x78] sm:$0xf]
        %v324 = vld [vmem:[%s274 + $0x7c] sm:$0xf]
        %v325 = vld [vmem:[%s274 + $0x80] sm:$0xf]
        %v326 = vld [vmem:[%s274 + $0x84] sm:$0xf]
        %v327 = vld [vmem:[%s274 + $0x88] sm:$0xf]
        %v328 = vld [vmem:[%s274 + $0x8c] sm:$0xf]
        %v329 = vld [vmem:[%s274 + $0x90] sm:$0xf]
        %v330 = vld [vmem:[%s274 + $0x94] sm:$0xf]
        %v331 = vld [vmem:[%s289] sm:$0xf]
        %v332 = vld [vmem:[%s289 + $0x4] sm:$0xf]
        %v333 = vld [vmem:[%s289 + $0x8] sm:$0xf]
        %v334 = vld [vmem:[%s289 + $0xc] sm:$0xf]
        %v335 = vld [vmem:[%s3] sm:$0xf]
        %v336 = vld [vmem:[%s3 + $0x4] sm:$0xf]
        %v337 = vld [vmem:[%s283] sm:$0xff]
        %v338 = vld [vmem:[%s283 + $0x8] sm:$0xff]
        %v339 = vld [vmem:[%s283 + $0x10] sm:$0xff]
        %v340 = vld [vmem:[%s283 + $0x18] sm:$0xff]
        %v345 = vunpack.c.l.b16 %v331
        %v346 = vunpack.c.l.b16 %v332
        %v347 = vunpack.c.l.b16 %v333
        %v348 = vunpack.c.l.b16 %v334
        %v349 = vpack.c.b16 %v346, %v345
        %v350 = vpack.c.b16 %v348, %v347
        %v353 = vunpack.c.l.b16 %v293
        %v354 = vunpack.c.l.b16 %v294
        %v355 = vpack.c.b16 %v354, %v353
        %vm357 = vcmask 130048
        %v359 = vsel %vm357, %v349, 0
        %v362 = vsel %vm357, %v350, 0
        %364 = vmatprep.subr.bf16.mxu0 0
        %365 = vmatpush1.bf16.msra.mxu0 %v355
        %366 = vmatprep.subr.bf16.mxu0 0
        %367 = vmatpush1.bf16.msra.mxu0 0
        %368 = vmatprep.subr.bf16.mxu0 0
        %369 = vmatpush1.bf16.msra.mxu0 0
        %370 = vmatprep.subr.bf16.mxu0 0
        %371 = vmatpush1.bf16.msra.mxu0 0
        %372 = vmatprep.subr.bf16.mxu0 0
        %373 = vmatpush1.bf16.msra.mxu0 0
        %374 = vmatprep.subr.bf16.mxu0 0
        %375 = vmatpush1.bf16.msra.mxu0 0
        %376 = vmatprep.subr.bf16.mxu0 0
        %377 = vmatpush1.bf16.msra.mxu0 0
        %378 = vmatprep.subr.bf16.mxu0 0
        %379 = vmatpush1.bf16.msra.mxu0 0
        %380 = vmatprep.subr.bf16.mxu0 0
        %381 = vmatpush1.bf16.msra.mxu0 0
        %382 = vmatprep.subr.bf16.mxu0 0
        %383 = vmatpush1.bf16.msra.mxu0 0
        %384 = vmatprep.subr.bf16.mxu0 0
        %385 = vmatpush1.bf16.msra.mxu0 0
        %386 = vmatprep.subr.bf16.mxu0 0
        %387 = vmatpush1.bf16.msra.mxu0 0
        %388 = vmatprep.subr.bf16.mxu0 0
        %389 = vmatpush1.bf16.msra.mxu0 0
        %390 = vmatprep.subr.bf16.mxu0 0
        %391 = vmatpush1.bf16.msra.mxu0 0
        %392 = vmatprep.subr.bf16.mxu0 0
        %393 = vmatpush1.bf16.msra.mxu0 0
        %394 = vmatprep.subr.bf16.mxu0 0
        %395 = vmatpush1.bf16.msra.mxu0 0
        %396 = vmatprep.mubr.bf16.mxu0 0
        %397 = vmatmul.mubr.bf16.gmra.mrb[0].mxu0 %v359
        %v398 = vpop.f32.mrb[0].mxu0
        %v399 = vadd.f32 0.0, %v398
        %v400 = vpop.f32.mrb[0].mxu0
        %v401 = vpop.f32.mrb[0].mxu0
        %v402 = vadd.f32 0.0, %v401
        %v403 = vpop.f32.mrb[0].mxu0
        %404 = vmatprep.mubr.bf16.mxu0 0
        %405 = vmatmul.mubr.bf16.gmra.mrb[0].mxu0 %v362
        %v406 = vpop.f32.mrb[0].mxu0
        %v407 = vadd.f32 0.0, %v406
        %v408 = vpop.f32.mrb[0].mxu0
        %v409 = vpop.f32.mrb[0].mxu0
        %v410 = vadd.f32 0.0, %v409
        %v411 = vpop.f32.mrb[0].mxu0
        %412 = vdwg.mxu0
        %v415 = vunpack.c.l.b16 %v295
        %v416 = vunpack.c.l.b16 %v296
        %v417 = vpack.c.b16 %v416, %v415
        %419 = vmatprep.subr.bf16.mxu0 0
        %420 = vmatpush1.bf16.msra.mxu0 %v417
        %421 = vmatprep.subr.bf16.mxu0 0
        %422 = vmatpush1.bf16.msra.mxu0 0
        %423 = vmatprep.subr.bf16.mxu0 0
        %424 = vmatpush1.bf16.msra.mxu0 0
        %425 = vmatprep.subr.bf16.mxu0 0
        %426 = vmatpush1.bf16.msra.mxu0 0
        %427 = vmatprep.subr.bf16.mxu0 0
        %428 = vmatpush1.bf16.msra.mxu0 0
        %429 = vmatprep.subr.bf16.mxu0 0
        %430 = vmatpush1.bf16.msra.mxu0 0
        %431 = vmatprep.subr.bf16.mxu0 0
        %432 = vmatpush1.bf16.msra.mxu0 0
        %433 = vmatprep.subr.bf16.mxu0 0
        %434 = vmatpush1.bf16.msra.mxu0 0
        %435 = vmatprep.subr.bf16.mxu0 0
        %436 = vmatpush1.bf16.msra.mxu0 0
        %437 = vmatprep.subr.bf16.mxu0 0
        %438 = vmatpush1.bf16.msra.mxu0 0
        %439 = vmatprep.subr.bf16.mxu0 0
        %440 = vmatpush1.bf16.msra.mxu0 0
        %441 = vmatprep.subr.bf16.mxu0 0
        %442 = vmatpush1.bf16.msra.mxu0 0
        %443 = vmatprep.subr.bf16.mxu0 0
        %444 = vmatpush1.bf16.msra.mxu0 0
        %445 = vmatprep.subr.bf16.mxu0 0
        %446 = vmatpush1.bf16.msra.mxu0 0
        %447 = vmatprep.subr.bf16.mxu0 0
        %448 = vmatpush1.bf16.msra.mxu0 0
        %449 = vmatprep.subr.bf16.mxu0 0
        %450 = vmatpush1.bf16.msra.mxu0 0
        %451 = vmatprep.mubr.bf16.mxu0 0
        %452 = vmatmul.mubr.bf16.gmra.mrb[0].mxu0 %v359
        %v453 = vpop.f32.mrb[0].mxu0
        %v454 = vadd.f32 0.0, %v453
        %v455 = vpop.f32.mrb[0].mxu0
        %v456 = vpop.f32.mrb[0].mxu0
        %v457 = vadd.f32 0.0, %v456
        %v458 = vpop.f32.mrb[0].mxu0
        %459 = vmatprep.mubr.bf16.mxu0 0
        %460 = vmatmul.mubr.bf16.gmra.mrb[0].mxu0 %v362
        %v461 = vpop.f32.mrb[0].mxu0
        %v462 = vadd.f32 0.0, %v461
        %v463 = vpop.f32.mrb[0].mxu0
        %v464 = vpop.f32.mrb[0].mxu0
        %v465 = vadd.f32 0.0, %v464
        %v466 = vpop.f32.mrb[0].mxu0
        %467 = vdwg.mxu0
        %v470 = vunpack.c.l.b16 %v297
        %v471 = vunpack.c.l.b16 %v298
        %v472 = vpack.c.b16 %v471, %v470
        %474 = vmatprep.subr.bf16.mxu0 0
        %475 = vmatpush1.bf16.msra.mxu0 %v472
        %476 = vmatprep.subr.bf16.mxu0 0
        %477 = vmatpush1.bf16.msra.mxu0 0
        %478 = vmatprep.subr.bf16.mxu0 0
        %479 = vmatpush1.bf16.msra.mxu0 0
        %480 = vmatprep.subr.bf16.mxu0 0
        %481 = vmatpush1.bf16.msra.mxu0 0
        %482 = vmatprep.subr.bf16.mxu0 0
        %483 = vmatpush1.bf16.msra.mxu0 0
        %484 = vmatprep.subr.bf16.mxu0 0
        %485 = vmatpush1.bf16.msra.mxu0 0
        %486 = vmatprep.subr.bf16.mxu0 0
        %487 = vmatpush1.bf16.msra.mxu0 0
        %488 = vmatprep.subr.bf16.mxu0 0
        %489 = vmatpush1.bf16.msra.mxu0 0
        %490 = vmatprep.subr.bf16.mxu0 0
        %491 = vmatpush1.bf16.msra.mxu0 0
        %492 = vmatprep.subr.bf16.mxu0 0
        %493 = vmatpush1.bf16.msra.mxu0 0
        %494 = vmatprep.subr.bf16.mxu0 0
        %495 = vmatpush1.bf16.msra.mxu0 0
        %496 = vmatprep.subr.bf16.mxu0 0
        %497 = vmatpush1.bf16.msra.mxu0 0
        %498 = vmatprep.subr.bf16.mxu0 0
        %499 = vmatpush1.bf16.msra.mxu0 0
        %500 = vmatprep.subr.bf16.mxu0 0
        %501 = vmatpush1.bf16.msra.mxu0 0
        %502 = vmatprep.subr.bf16.mxu0 0
        %503 = vmatpush1.bf16.msra.mxu0 0
        %504 = vmatprep.subr.bf16.mxu0 0
        %505 = vmatpush1.bf16.msra.mxu0 0
        %506 = vmatprep.mubr.bf16.mxu0 0
        %507 = vmatmul.mubr.bf16.gmra.mrb[0].mxu0 %v359
        %v508 = vpop.f32.mrb[0].mxu0
        %v509 = vadd.f32 0.0, %v508
        %v510 = vpop.f32.mrb[0].mxu0
        %v511 = vpop.f32.mrb[0].mxu0
        %v512 = vadd.f32 0.0, %v511
        %v513 = vpop.f32.mrb[0].mxu0
        %514 = vmatprep.mubr.bf16.mxu0 0
        %515 = vmatmul.mubr.bf16.gmra.mrb[0].mxu0 %v362
        %v516 = vpop.f32.mrb[0].mxu0
        %v517 = vadd.f32 0.0, %v516
        %v518 = vpop.f32.mrb[0].mxu0
        %v519 = vpop.f32.mrb[0].mxu0
        %v520 = vadd.f32 0.0, %v519
        %v521 = vpop.f32.mrb[0].mxu0
        %522 = vdwg.mxu0
        %v525 = vunpack.c.l.b16 %v299
        %v526 = vunpack.c.l.b16 %v300
        %v527 = vpack.c.b16 %v526, %v525
        %529 = vmatprep.subr.bf16.mxu0 0
        %530 = vmatpush1.bf16.msra.mxu0 %v527
        %531 = vmatprep.subr.bf16.mxu0 0
        %532 = vmatpush1.bf16.msra.mxu0 0
        %533 = vmatprep.subr.bf16.mxu0 0
        %534 = vmatpush1.bf16.msra.mxu0 0
        %535 = vmatprep.subr.bf16.mxu0 0
        %536 = vmatpush1.bf16.msra.mxu0 0
        %537 = vmatprep.subr.bf16.mxu0 0
        %538 = vmatpush1.bf16.msra.mxu0 0
        %539 = vmatprep.subr.bf16.mxu0 0
        %540 = vmatpush1.bf16.msra.mxu0 0
        %541 = vmatprep.subr.bf16.mxu0 0
        %542 = vmatpush1.bf16.msra.mxu0 0
        %543 = vmatprep.subr.bf16.mxu0 0
        %544 = vmatpush1.bf16.msra.mxu0 0
        %545 = vmatprep.subr.bf16.mxu0 0
        %546 = vmatpush1.bf16.msra.mxu0 0
        %547 = vmatprep.subr.bf16.mxu0 0
        %548 = vmatpush1.bf16.msra.mxu0 0
        %549 = vmatprep.subr.bf16.mxu0 0
        %550 = vmatpush1.bf16.msra.mxu0 0
        %551 = vmatprep.subr.bf16.mxu0 0
        %552 = vmatpush1.bf16.msra.mxu0 0
        %553 = vmatprep.subr.bf16.mxu0 0
        %554 = vmatpush1.bf16.msra.mxu0 0
        %555 = vmatprep.subr.bf16.mxu0 0
        %556 = vmatpush1.bf16.msra.mxu0 0
        %557 = vmatprep.subr.bf16.mxu0 0
        %558 = vmatpush1.bf16.msra.mxu0 0
        %559 = vmatprep.subr.bf16.mxu0 0
        %560 = vmatpush1.bf16.msra.mxu0 0
        %561 = vmatprep.mubr.bf16.mxu0 0
        %562 = vmatmul.mubr.bf16.gmra.mrb[0].mxu0 %v359
        %v563 = vpop.f32.mrb[0].mxu0
        %v564 = vadd.f32 0.0, %v563
        %v565 = vpop.f32.mrb[0].mxu0
        %v566 = vpop.f32.mrb[0].mxu0
        %v567 = vadd.f32 0.0, %v566
        %v568 = vpop.f32.mrb[0].mxu0
        %569 = vmatprep.mubr.bf16.mxu0 0
        %570 = vmatmul.mubr.bf16.gmra.mrb[0].mxu0 %v362
        %v571 = vpop.f32.mrb[0].mxu0
        %v572 = vadd.f32 0.0, %v571
        %v573 = vpop.f32.mrb[0].mxu0
        %v574 = vpop.f32.mrb[0].mxu0
        %v575 = vadd.f32 0.0, %v574
        %v576 = vpop.f32.mrb[0].mxu0
        %577 = vdwg.mxu0
        %v580 = vunpack.c.l.b16 %v301
        %v581 = vunpack.c.l.b16 %v302
        %v582 = vpack.c.b16 %v581, %v580
        %584 = vmatprep.subr.bf16.mxu0 0
        %585 = vmatpush1.bf16.msra.mxu0 %v582
        %586 = vmatprep.subr.bf16.mxu0 0
        %587 = vmatpush1.bf16.msra.mxu0 0
        %588 = vmatprep.subr.bf16.mxu0 0
        %589 = vmatpush1.bf16.msra.mxu0 0
        %590 = vmatprep.subr.bf16.mxu0 0
        %591 = vmatpush1.bf16.msra.mxu0 0
        %592 = vmatprep.subr.bf16.mxu0 0
        %593 = vmatpush1.bf16.msra.mxu0 0
        %594 = vmatprep.subr.bf16.mxu0 0
        %595 = vmatpush1.bf16.msra.mxu0 0
        %596 = vmatprep.subr.bf16.mxu0 0
        %597 = vmatpush1.bf16.msra.mxu0 0
        %598 = vmatprep.subr.bf16.mxu0 0
        %599 = vmatpush1.bf16.msra.mxu0 0
        %600 = vmatprep.subr.bf16.mxu0 0
        %601 = vmatpush1.bf16.msra.mxu0 0
        %602 = vmatprep.subr.bf16.mxu0 0
        %603 = vmatpush1.bf16.msra.mxu0 0
        %604 = vmatprep.subr.bf16.mxu0 0
        %605 = vmatpush1.bf16.msra.mxu0 0
        %606 = vmatprep.subr.bf16.mxu0 0
        %607 = vmatpush1.bf16.msra.mxu0 0
        %608 = vmatprep.subr.bf16.mxu0 0
        %609 = vmatpush1.bf16.msra.mxu0 0
        %610 = vmatprep.subr.bf16.mxu0 0
        %611 = vmatpush1.bf16.msra.mxu0 0
        %612 = vmatprep.subr.bf16.mxu0 0
        %613 = vmatpush1.bf16.msra.mxu0 0
        %614 = vmatprep.subr.bf16.mxu0 0
        %615 = vmatpush1.bf16.msra.mxu0 0
        %616 = vmatprep.mubr.bf16.mxu0 0
        %617 = vmatmul.mubr.bf16.gmra.mrb[0].mxu0 %v359
        %v618 = vpop.f32.mrb[0].mxu0
        %v619 = vadd.f32 0.0, %v618
        %v620 = vpop.f32.mrb[0].mxu0
        %v621 = vpop.f32.mrb[0].mxu0
        %v622 = vadd.f32 0.0, %v621
        %v623 = vpop.f32.mrb[0].mxu0
        %624 = vmatprep.mubr.bf16.mxu0 0
        %625 = vmatmul.mubr.bf16.gmra.mrb[0].mxu0 %v362
        %v626 = vpop.f32.mrb[0].mxu0
        %v627 = vadd.f32 0.0, %v626
        %v628 = vpop.f32.mrb[0].mxu0
        %v629 = vpop.f32.mrb[0].mxu0
        %v630 = vadd.f32 0.0, %v629
        %v631 = vpop.f32.mrb[0].mxu0
        %632 = vdwg.mxu0
        %v635 = vunpack.c.l.b16 %v303
        %v636 = vunpack.c.l.b16 %v304
        %v637 = vpack.c.b16 %v636, %v635
        %639 = vmatprep.subr.bf16.mxu0 0
        %640 = vmatpush1.bf16.msra.mxu0 %v637
        %641 = vmatprep.subr.bf16.mxu0 0
        %642 = vmatpush1.bf16.msra.mxu0 0
        %643 = vmatprep.subr.bf16.mxu0 0
        %644 = vmatpush1.bf16.msra.mxu0 0
        %645 = vmatprep.subr.bf16.mxu0 0
        %646 = vmatpush1.bf16.msra.mxu0 0
        %647 = vmatprep.subr.bf16.mxu0 0
        %648 = vmatpush1.bf16.msra.mxu0 0
        %649 = vmatprep.subr.bf16.mxu0 0
        %650 = vmatpush1.bf16.msra.mxu0 0
        %651 = vmatprep.subr.bf16.mxu0 0
        %652 = vmatpush1.bf16.msra.mxu0 0
        %653 = vmatprep.subr.bf16.mxu0 0
        %654 = vmatpush1.bf16.msra.mxu0 0
        %655 = vmatprep.subr.bf16.mxu0 0
        %656 = vmatpush1.bf16.msra.mxu0 0
        %657 = vmatprep.subr.bf16.mxu0 0
        %658 = vmatpush1.bf16.msra.mxu0 0
        %659 = vmatprep.subr.bf16.mxu0 0
        %660 = vmatpush1.bf16.msra.mxu0 0
        %661 = vmatprep.subr.bf16.mxu0 0
        %662 = vmatpush1.bf16.msra.mxu0 0
        %663 = vmatprep.subr.bf16.mxu0 0
        %664 = vmatpush1.bf16.msra.mxu0 0
        %665 = vmatprep.subr.bf16.mxu0 0
        %666 = vmatpush1.bf16.msra.mxu0 0
        %667 = vmatprep.subr.bf16.mxu0 0
        %668 = vmatpush1.bf16.msra.mxu0 0
        %669 = vmatprep.subr.bf16.mxu0 0
        %670 = vmatpush1.bf16.msra.mxu0 0
        %671 = vmatprep.mubr.bf16.mxu0 0
        %672 = vmatmul.mubr.bf16.gmra.mrb[0].mxu0 %v359
        %v673 = vpop.f32.mrb[0].mxu0
        %v674 = vadd.f32 0.0, %v673
        %v675 = vpop.f32.mrb[0].mxu0
        %v676 = vpop.f32.mrb[0].mxu0
        %v677 = vadd.f32 0.0, %v676
        %v678 = vpop.f32.mrb[0].mxu0
        %679 = vmatprep.mubr.bf16.mxu0 0
        %680 = vmatmul.mubr.bf16.gmra.mrb[0].mxu0 %v362
        %v681 = vpop.f32.mrb[0].mxu0
        %v682 = vadd.f32 0.0, %v681
        %v683 = vpop.f32.mrb[0].mxu0
        %v684 = vpop.f32.mrb[0].mxu0
        %v685 = vadd.f32 0.0, %v684
        %v686 = vpop.f32.mrb[0].mxu0
        %687 = vdwg.mxu0
        %v690 = vunpack.c.l.b16 %v305
        %v691 = vunpack.c.l.b16 %v306
        %v692 = vpack.c.b16 %v691, %v690
        %694 = vmatprep.subr.bf16.mxu0 0
        %695 = vmatpush1.bf16.msra.mxu0 %v692
        %696 = vmatprep.subr.bf16.mxu0 0
        %697 = vmatpush1.bf16.msra.mxu0 0
        %698 = vmatprep.subr.bf16.mxu0 0
        %699 = vmatpush1.bf16.msra.mxu0 0
        %700 = vmatprep.subr.bf16.mxu0 0
        %701 = vmatpush1.bf16.msra.mxu0 0
        %702 = vmatprep.subr.bf16.mxu0 0
        %703 = vmatpush1.bf16.msra.mxu0 0
        %704 = vmatprep.subr.bf16.mxu0 0
        %705 = vmatpush1.bf16.msra.mxu0 0
        %706 = vmatprep.subr.bf16.mxu0 0
        %707 = vmatpush1.bf16.msra.mxu0 0
        %708 = vmatprep.subr.bf16.mxu0 0
        %709 = vmatpush1.bf16.msra.mxu0 0
        %710 = vmatprep.subr.bf16.mxu0 0
        %711 = vmatpush1.bf16.msra.mxu0 0
        %712 = vmatprep.subr.bf16.mxu0 0
        %713 = vmatpush1.bf16.msra.mxu0 0
        %714 = vmatprep.subr.bf16.mxu0 0
        %715 = vmatpush1.bf16.msra.mxu0 0
        %716 = vmatprep.subr.bf16.mxu0 0
        %717 = vmatpush1.bf16.msra.mxu0 0
        %718 = vmatprep.subr.bf16.mxu0 0
        %719 = vmatpush1.bf16.msra.mxu0 0
        %720 = vmatprep.subr.bf16.mxu0 0
        %721 = vmatpush1.bf16.msra.mxu0 0
        %722 = vmatprep.subr.bf16.mxu0 0
        %723 = vmatpush1.bf16.msra.mxu0 0
        %724 = vmatprep.subr.bf16.mxu0 0
        %725 = vmatpush1.bf16.msra.mxu0 0
        %726 = vmatprep.mubr.bf16.mxu0 0
        %727 = vmatmul.mubr.bf16.gmra.mrb[0].mxu0 %v359
        %v728 = vpop.f32.mrb[0].mxu0
        %v729 = vadd.f32 0.0, %v728
        %v730 = vpop.f32.mrb[0].mxu0
        %v731 = vpop.f32.mrb[0].mxu0
        %v732 = vadd.f32 0.0, %v731
        %v733 = vpop.f32.mrb[0].mxu0
        %734 = vmatprep.mubr.bf16.mxu0 0
        %735 = vmatmul.mubr.bf16.gmra.mrb[0].mxu0 %v362
        %v736 = vpop.f32.mrb[0].mxu0
        %v737 = vadd.f32 0.0, %v736
        %v738 = vpop.f32.mrb[0].mxu0
        %v739 = vpop.f32.mrb[0].mxu0
        %v740 = vadd.f32 0.0, %v739
        %v741 = vpop.f32.mrb[0].mxu0
        %742 = vdwg.mxu0
        %v745 = vunpack.c.l.b16 %v307
        %v746 = vunpack.c.l.b16 %v308
        %v747 = vpack.c.b16 %v746, %v745
        %749 = vmatprep.subr.bf16.mxu0 0
        %750 = vmatpush1.bf16.msra.mxu0 %v747
        %751 = vmatprep.subr.bf16.mxu0 0
        %752 = vmatpush1.bf16.msra.mxu0 0
        %753 = vmatprep.subr.bf16.mxu0 0
        %754 = vmatpush1.bf16.msra.mxu0 0
        %755 = vmatprep.subr.bf16.mxu0 0
        %756 = vmatpush1.bf16.msra.mxu0 0
        %757 = vmatprep.subr.bf16.mxu0 0
        %758 = vmatpush1.bf16.msra.mxu0 0
        %759 = vmatprep.subr.bf16.mxu0 0
        %760 = vmatpush1.bf16.msra.mxu0 0
        %761 = vmatprep.subr.bf16.mxu0 0
        %762 = vmatpush1.bf16.msra.mxu0 0
        %763 = vmatprep.subr.bf16.mxu0 0
        %764 = vmatpush1.bf16.msra.mxu0 0
        %765 = vmatprep.subr.bf16.mxu0 0
        %766 = vmatpush1.bf16.msra.mxu0 0
        %767 = vmatprep.subr.bf16.mxu0 0
        %768 = vmatpush1.bf16.msra.mxu0 0
        %769 = vmatprep.subr.bf16.mxu0 0
        %770 = vmatpush1.bf16.msra.mxu0 0
        %771 = vmatprep.subr.bf16.mxu0 0
        %772 = vmatpush1.bf16.msra.mxu0 0
        %773 = vmatprep.subr.bf16.mxu0 0
        %774 = vmatpush1.bf16.msra.mxu0 0
        %775 = vmatprep.subr.bf16.mxu0 0
        %776 = vmatpush1.bf16.msra.mxu0 0
        %777 = vmatprep.subr.bf16.mxu0 0
        %778 = vmatpush1.bf16.msra.mxu0 0
        %779 = vmatprep.subr.bf16.mxu0 0
        %780 = vmatpush1.bf16.msra.mxu0 0
        %781 = vmatprep.mubr.bf16.mxu0 0
        %782 = vmatmul.mubr.bf16.gmra.mrb[0].mxu0 %v359
        %v783 = vpop.f32.mrb[0].mxu0
        %v784 = vadd.f32 0.0, %v783
        %v785 = vpop.f32.mrb[0].mxu0
        %v786 = vpop.f32.mrb[0].mxu0
        %v787 = vadd.f32 0.0, %v786
        %v788 = vpop.f32.mrb[0].mxu0
        %789 = vmatprep.mubr.bf16.mxu0 0
        %790 = vmatmul.mubr.bf16.gmra.mrb[0].mxu0 %v362
        %v791 = vpop.f32.mrb[0].mxu0
        %v792 = vadd.f32 0.0, %v791
        %v793 = vpop.f32.mrb[0].mxu0
        %v794 = vpop.f32.mrb[0].mxu0
        %v795 = vadd.f32 0.0, %v794
        %v796 = vpop.f32.mrb[0].mxu0
        %797 = vdwg.mxu0
        %v800 = vunpack.c.l.b16 %v309
        %v801 = vunpack.c.l.b16 %v310
        %v802 = vpack.c.b16 %v801, %v800
        %804 = vmatprep.subr.bf16.mxu0 0
        %805 = vmatpush1.bf16.msra.mxu0 %v802
        %806 = vmatprep.subr.bf16.mxu0 0
        %807 = vmatpush1.bf16.msra.mxu0 0
        %808 = vmatprep.subr.bf16.mxu0 0
        %809 = vmatpush1.bf16.msra.mxu0 0
        %810 = vmatprep.subr.bf16.mxu0 0
        %811 = vmatpush1.bf16.msra.mxu0 0
        %812 = vmatprep.subr.bf16.mxu0 0
        %813 = vmatpush1.bf16.msra.mxu0 0
        %814 = vmatprep.subr.bf16.mxu0 0
        %815 = vmatpush1.bf16.msra.mxu0 0
        %816 = vmatprep.subr.bf16.mxu0 0
        %817 = vmatpush1.bf16.msra.mxu0 0
        %818 = vmatprep.subr.bf16.mxu0 0
        %819 = vmatpush1.bf16.msra.mxu0 0
        %820 = vmatprep.subr.bf16.mxu0 0
        %821 = vmatpush1.bf16.msra.mxu0 0
        %822 = vmatprep.subr.bf16.mxu0 0
        %823 = vmatpush1.bf16.msra.mxu0 0
        %824 = vmatprep.subr.bf16.mxu0 0
        %825 = vmatpush1.bf16.msra.mxu0 0
        %826 = vmatprep.subr.bf16.mxu0 0
        %827 = vmatpush1.bf16.msra.mxu0 0
        %828 = vmatprep.subr.bf16.mxu0 0
        %829 = vmatpush1.bf16.msra.mxu0 0
        %830 = vmatprep.subr.bf16.mxu0 0
        %831 = vmatpush1.bf16.msra.mxu0 0
        %832 = vmatprep.subr.bf16.mxu0 0
        %833 = vmatpush1.bf16.msra.mxu0 0
        %834 = vmatprep.subr.bf16.mxu0 0
        %835 = vmatpush1.bf16.msra.mxu0 0
        %836 = vmatprep.mubr.bf16.mxu0 0
        %837 = vmatmul.mubr.bf16.gmra.mrb[0].mxu0 %v359
        %v838 = vpop.f32.mrb[0].mxu0
        %v839 = vadd.f32 0.0, %v838
        %v840 = vpop.f32.mrb[0].mxu0
        %v841 = vpop.f32.mrb[0].mxu0
        %v842 = vadd.f32 0.0, %v841
        %v843 = vpop.f32.mrb[0].mxu0
        %844 = vmatprep.mubr.bf16.mxu0 0
        %845 = vmatmul.mubr.bf16.gmra.mrb[0].mxu0 %v362
        %v846 = vpop.f32.mrb[0].mxu0
        %v847 = vadd.f32 0.0, %v846
        %v848 = vpop.f32.mrb[0].mxu0
        %v849 = vpop.f32.mrb[0].mxu0
        %v850 = vadd.f32 0.0, %v849
        %v851 = vpop.f32.mrb[0].mxu0
        %852 = vdwg.mxu0
        %v855 = vunpack.c.l.b16 %v311
        %v856 = vunpack.c.l.b16 %v312
        %v857 = vpack.c.b16 %v856, %v855
        %859 = vmatprep.subr.bf16.mxu0 0
        %860 = vmatpush1.bf16.msra.mxu0 %v857
        %861 = vmatprep.subr.bf16.mxu0 0
        %862 = vmatpush1.bf16.msra.mxu0 0
        %863 = vmatprep.subr.bf16.mxu0 0
        %864 = vmatpush1.bf16.msra.mxu0 0
        %865 = vmatprep.subr.bf16.mxu0 0
        %866 = vmatpush1.bf16.msra.mxu0 0
        %867 = vmatprep.subr.bf16.mxu0 0
        %868 = vmatpush1.bf16.msra.mxu0 0
        %869 = vmatprep.subr.bf16.mxu0 0
        %870 = vmatpush1.bf16.msra.mxu0 0
        %871 = vmatprep.subr.bf16.mxu0 0
        %872 = vmatpush1.bf16.msra.mxu0 0
        %873 = vmatprep.subr.bf16.mxu0 0
        %874 = vmatpush1.bf16.msra.mxu0 0
        %875 = vmatprep.subr.bf16.mxu0 0
        %876 = vmatpush1.bf16.msra.mxu0 0
        %877 = vmatprep.subr.bf16.mxu0 0
        %878 = vmatpush1.bf16.msra.mxu0 0
        %879 = vmatprep.subr.bf16.mxu0 0
        %880 = vmatpush1.bf16.msra.mxu0 0
        %881 = vmatprep.subr.bf16.mxu0 0
        %882 = vmatpush1.bf16.msra.mxu0 0
        %883 = vmatprep.subr.bf16.mxu0 0
        %884 = vmatpush1.bf16.msra.mxu0 0
        %885 = vmatprep.subr.bf16.mxu0 0
        %886 = vmatpush1.bf16.msra.mxu0 0
        %887 = vmatprep.subr.bf16.mxu0 0
        %888 = vmatpush1.bf16.msra.mxu0 0
        %889 = vmatprep.subr.bf16.mxu0 0
        %890 = vmatpush1.bf16.msra.mxu0 0
        %891 = vmatprep.mubr.bf16.mxu0 0
        %892 = vmatmul.mubr.bf16.gmra.mrb[0].mxu0 %v359
        %v893 = vpop.f32.mrb[0].mxu0
        %v894 = vadd.f32 0.0, %v893
        %v895 = vpop.f32.mrb[0].mxu0
        %v896 = vpop.f32.mrb[0].mxu0
        %v897 = vadd.f32 0.0, %v896
        %v898 = vpop.f32.mrb[0].mxu0
        %899 = vmatprep.mubr.bf16.mxu0 0
        %900 = vmatmul.mubr.bf16.gmra.mrb[0].mxu0 %v362
        %v901 = vpop.f32.mrb[0].mxu0
        %v902 = vadd.f32 0.0, %v901
        %v903 = vpop.f32.mrb[0].mxu0
        %v904 = vpop.f32.mrb[0].mxu0
        %v905 = vadd.f32 0.0, %v904
        %v906 = vpop.f32.mrb[0].mxu0
        %907 = vdwg.mxu0
        %v910 = vunpack.c.l.b16 %v313
        %v911 = vunpack.c.l.b16 %v314
        %v912 = vpack.c.b16 %v911, %v910
        %914 = vmatprep.subr.bf16.mxu0 0
        %915 = vmatpush1.bf16.msra.mxu0 %v912
        %916 = vmatprep.subr.bf16.mxu0 0
        %917 = vmatpush1.bf16.msra.mxu0 0
        %918 = vmatprep.subr.bf16.mxu0 0
        %919 = vmatpush1.bf16.msra.mxu0 0
        %920 = vmatprep.subr.bf16.mxu0 0
        %921 = vmatpush1.bf16.msra.mxu0 0
        %922 = vmatprep.subr.bf16.mxu0 0
        %923 = vmatpush1.bf16.msra.mxu0 0
        %924 = vmatprep.subr.bf16.mxu0 0
        %925 = vmatpush1.bf16.msra.mxu0 0
        %926 = vmatprep.subr.bf16.mxu0 0
        %927 = vmatpush1.bf16.msra.mxu0 0
        %928 = vmatprep.subr.bf16.mxu0 0
        %929 = vmatpush1.bf16.msra.mxu0 0
        %930 = vmatprep.subr.bf16.mxu0 0
        %931 = vmatpush1.bf16.msra.mxu0 0
        %932 = vmatprep.subr.bf16.mxu0 0
        %933 = vmatpush1.bf16.msra.mxu0 0
        %934 = vmatprep.subr.bf16.mxu0 0
        %935 = vmatpush1.bf16.msra.mxu0 0
        %936 = vmatprep.subr.bf16.mxu0 0
        %937 = vmatpush1.bf16.msra.mxu0 0
        %938 = vmatprep.subr.bf16.mxu0 0
        %939 = vmatpush1.bf16.msra.mxu0 0
        %940 = vmatprep.subr.bf16.mxu0 0
        %941 = vmatpush1.bf16.msra.mxu0 0
        %942 = vmatprep.subr.bf16.mxu0 0
        %943 = vmatpush1.bf16.msra.mxu0 0
        %944 = vmatprep.subr.bf16.mxu0 0
        %945 = vmatpush1.bf16.msra.mxu0 0
        %946 = vmatprep.mubr.bf16.mxu0 0
        %947 = vmatmul.mubr.bf16.gmra.mrb[0].mxu0 %v359
        %v948 = vpop.f32.mrb[0].mxu0
        %v949 = vadd.f32 0.0, %v948
        %v950 = vpop.f32.mrb[0].mxu0
        %v951 = vpop.f32.mrb[0].mxu0
        %v952 = vadd.f32 0.0, %v951
        %v953 = vpop.f32.mrb[0].mxu0
        %954 = vmatprep.mubr.bf16.mxu0 0
        %955 = vmatmul.mubr.bf16.gmra.mrb[0].mxu0 %v362
        %v956 = vpop.f32.mrb[0].mxu0
        %v957 = vadd.f32 0.0, %v956
        %v958 = vpop.f32.mrb[0].mxu0
        %v959 = vpop.f32.mrb[0].mxu0
        %v960 = vadd.f32 0.0, %v959
        %v961 = vpop.f32.mrb[0].mxu0
        %962 = vdwg.mxu0
        %v965 = vunpack.c.l.b16 %v315
        %v966 = vunpack.c.l.b16 %v316
        %v967 = vpack.c.b16 %v966, %v965
        %969 = vmatprep.subr.bf16.mxu0 0
        %970 = vmatpush1.bf16.msra.mxu0 %v967
        %971 = vmatprep.subr.bf16.mxu0 0
        %972 = vmatpush1.bf16.msra.mxu0 0
        %973 = vmatprep.subr.bf16.mxu0 0
        %974 = vmatpush1.bf16.msra.mxu0 0
        %975 = vmatprep.subr.bf16.mxu0 0
        %976 = vmatpush1.bf16.msra.mxu0 0
        %977 = vmatprep.subr.bf16.mxu0 0
        %978 = vmatpush1.bf16.msra.mxu0 0
        %979 = vmatprep.subr.bf16.mxu0 0
        %980 = vmatpush1.bf16.msra.mxu0 0
        %981 = vmatprep.subr.bf16.mxu0 0
        %982 = vmatpush1.bf16.msra.mxu0 0
        %983 = vmatprep.subr.bf16.mxu0 0
        %984 = vmatpush1.bf16.msra.mxu0 0
        %985 = vmatprep.subr.bf16.mxu0 0
        %986 = vmatpush1.bf16.msra.mxu0 0
        %987 = vmatprep.subr.bf16.mxu0 0
        %988 = vmatpush1.bf16.msra.mxu0 0
        %989 = vmatprep.subr.bf16.mxu0 0
        %990 = vmatpush1.bf16.msra.mxu0 0
        %991 = vmatprep.subr.bf16.mxu0 0
        %992 = vmatpush1.bf16.msra.mxu0 0
        %993 = vmatprep.subr.bf16.mxu0 0
        %994 = vmatpush1.bf16.msra.mxu0 0
        %995 = vmatprep.subr.bf16.mxu0 0
        %996 = vmatpush1.bf16.msra.mxu0 0
        %997 = vmatprep.subr.bf16.mxu0 0
        %998 = vmatpush1.bf16.msra.mxu0 0
        %999 = vmatprep.subr.bf16.mxu0 0
        %1000 = vmatpush1.bf16.msra.mxu0 0
        %1001 = vmatprep.mubr.bf16.mxu0 0
        %1002 = vmatmul.mubr.bf16.gmra.mrb[0].mxu0 %v359
        %v1003 = vpop.f32.mrb[0].mxu0
        %v1004 = vadd.f32 0.0, %v1003
        %v1005 = vpop.f32.mrb[0].mxu0
        %v1006 = vpop.f32.mrb[0].mxu0
        %v1007 = vadd.f32 0.0, %v1006
        %v1008 = vpop.f32.mrb[0].mxu0
        %1009 = vmatprep.mubr.bf16.mxu0 0
        %1010 = vmatmul.mubr.bf16.gmra.mrb[0].mxu0 %v362
        %v1011 = vpop.f32.mrb[0].mxu0
        %v1012 = vadd.f32 0.0, %v1011
        %v1013 = vpop.f32.mrb[0].mxu0
        %v1014 = vpop.f32.mrb[0].mxu0
        %v1015 = vadd.f32 0.0, %v1014
        %v1016 = vpop.f32.mrb[0].mxu0
        %1017 = vdwg.mxu0
        %v1020 = vunpack.c.l.b16 %v317
        %v1021 = vunpack.c.l.b16 %v318
        %v1022 = vpack.c.b16 %v1021, %v1020
        %1024 = vmatprep.subr.bf16.mxu0 0
        %1025 = vmatpush1.bf16.msra.mxu0 %v1022
        %1026 = vmatprep.subr.bf16.mxu0 0
        %1027 = vmatpush1.bf16.msra.mxu0 0
        %1028 = vmatprep.subr.bf16.mxu0 0
        %1029 = vmatpush1.bf16.msra.mxu0 0
        %1030 = vmatprep.subr.bf16.mxu0 0
        %1031 = vmatpush1.bf16.msra.mxu0 0
        %1032 = vmatprep.subr.bf16.mxu0 0
        %1033 = vmatpush1.bf16.msra.mxu0 0
        %1034 = vmatprep.subr.bf16.mxu0 0
        %1035 = vmatpush1.bf16.msra.mxu0 0
        %1036 = vmatprep.subr.bf16.mxu0 0
        %1037 = vmatpush1.bf16.msra.mxu0 0
        %1038 = vmatprep.subr.bf16.mxu0 0
        %1039 = vmatpush1.bf16.msra.mxu0 0
        %1040 = vmatprep.subr.bf16.mxu0 0
        %1041 = vmatpush1.bf16.msra.mxu0 0
        %1042 = vmatprep.subr.bf16.mxu0 0
        %1043 = vmatpush1.bf16.msra.mxu0 0
        %1044 = vmatprep.subr.bf16.mxu0 0
        %1045 = vmatpush1.bf16.msra.mxu0 0
        %1046 = vmatprep.subr.bf16.mxu0 0
        %1047 = vmatpush1.bf16.msra.mxu0 0
        %1048 = vmatprep.subr.bf16.mxu0 0
        %1049 = vmatpush1.bf16.msra.mxu0 0
        %1050 = vmatprep.subr.bf16.mxu0 0
        %1051 = vmatpush1.bf16.msra.mxu0 0
        %1052 = vmatprep.subr.bf16.mxu0 0
        %1053 = vmatpush1.bf16.msra.mxu0 0
        %1054 = vmatprep.subr.bf16.mxu0 0
        %1055 = vmatpush1.bf16.msra.mxu0 0
        %1056 = vmatprep.mubr.bf16.mxu0 0
        %1057 = vmatmul.mubr.bf16.gmra.mrb[0].mxu0 %v359
        %v1058 = vpop.f32.mrb[0].mxu0
        %v1059 = vadd.f32 0.0, %v1058
        %v1060 = vpop.f32.mrb[0].mxu0
        %v1061 = vpop.f32.mrb[0].mxu0
        %v1062 = vadd.f32 0.0, %v1061
        %v1063 = vpop.f32.mrb[0].mxu0
        %1064 = vmatprep.mubr.bf16.mxu0 0
        %1065 = vmatmul.mubr.bf16.gmra.mrb[0].mxu0 %v362
        %v1066 = vpop.f32.mrb[0].mxu0
        %v1067 = vadd.f32 0.0, %v1066
        %v1068 = vpop.f32.mrb[0].mxu0
        %v1069 = vpop.f32.mrb[0].mxu0
        %v1070 = vadd.f32 0.0, %v1069
        %v1071 = vpop.f32.mrb[0].mxu0
        %1072 = vdwg.mxu0
        %v1075 = vunpack.c.l.b16 %v319
        %v1076 = vunpack.c.l.b16 %v320
        %v1077 = vpack.c.b16 %v1076, %v1075
        %1079 = vmatprep.subr.bf16.mxu0 0
        %1080 = vmatpush1.bf16.msra.mxu0 %v1077
        %1081 = vmatprep.subr.bf16.mxu0 0
        %1082 = vmatpush1.bf16.msra.mxu0 0
        %1083 = vmatprep.subr.bf16.mxu0 0
        %1084 = vmatpush1.bf16.msra.mxu0 0
        %1085 = vmatprep.subr.bf16.mxu0 0
        %1086 = vmatpush1.bf16.msra.mxu0 0
        %1087 = vmatprep.subr.bf16.mxu0 0
        %1088 = vmatpush1.bf16.msra.mxu0 0
        %1089 = vmatprep.subr.bf16.mxu0 0
        %1090 = vmatpush1.bf16.msra.mxu0 0
        %1091 = vmatprep.subr.bf16.mxu0 0
        %1092 = vmatpush1.bf16.msra.mxu0 0
        %1093 = vmatprep.subr.bf16.mxu0 0
        %1094 = vmatpush1.bf16.msra.mxu0 0
        %1095 = vmatprep.subr.bf16.mxu0 0
        %1096 = vmatpush1.bf16.msra.mxu0 0
        %1097 = vmatprep.subr.bf16.mxu0 0
        %1098 = vmatpush1.bf16.msra.mxu0 0
        %1099 = vmatprep.subr.bf16.mxu0 0
        %1100 = vmatpush1.bf16.msra.mxu0 0
        %1101 = vmatprep.subr.bf16.mxu0 0
        %1102 = vmatpush1.bf16.msra.mxu0 0
        %1103 = vmatprep.subr.bf16.mxu0 0
        %1104 = vmatpush1.bf16.msra.mxu0 0
        %1105 = vmatprep.subr.bf16.mxu0 0
        %1106 = vmatpush1.bf16.msra.mxu0 0
        %1107 = vmatprep.subr.bf16.mxu0 0
        %1108 = vmatpush1.bf16.msra.mxu0 0
        %1109 = vmatprep.subr.bf16.mxu0 0
        %1110 = vmatpush1.bf16.msra.mxu0 0
        %1111 = vmatprep.mubr.bf16.mxu0 0
        %1112 = vmatmul.mubr.bf16.gmra.mrb[0].mxu0 %v359
        %v1113 = vpop.f32.mrb[0].mxu0
        %v1114 = vadd.f32 0.0, %v1113
        %v1115 = vpop.f32.mrb[0].mxu0
        %v1116 = vpop.f32.mrb[0].mxu0
        %v1117 = vadd.f32 0.0, %v1116
        %v1118 = vpop.f32.mrb[0].mxu0
        %1119 = vmatprep.mubr.bf16.mxu0 0
        %1120 = vmatmul.mubr.bf16.gmra.mrb[0].mxu0 %v362
        %v1121 = vpop.f32.mrb[0].mxu0
        %v1122 = vadd.f32 0.0, %v1121
        %v1123 = vpop.f32.mrb[0].mxu0
        %v1124 = vpop.f32.mrb[0].mxu0
        %v1125 = vadd.f32 0.0, %v1124
        %v1126 = vpop.f32.mrb[0].mxu0
        %1127 = vdwg.mxu0
        %v1130 = vunpack.c.l.b16 %v321
        %v1131 = vunpack.c.l.b16 %v322
        %v1132 = vpack.c.b16 %v1131, %v1130
        %1134 = vmatprep.subr.bf16.mxu0 0
        %1135 = vmatpush1.bf16.msra.mxu0 %v1132
        %1136 = vmatprep.subr.bf16.mxu0 0
        %1137 = vmatpush1.bf16.msra.mxu0 0
        %1138 = vmatprep.subr.bf16.mxu0 0
        %1139 = vmatpush1.bf16.msra.mxu0 0
        %1140 = vmatprep.subr.bf16.mxu0 0
        %1141 = vmatpush1.bf16.msra.mxu0 0
        %1142 = vmatprep.subr.bf16.mxu0 0
        %1143 = vmatpush1.bf16.msra.mxu0 0
        %1144 = vmatprep.subr.bf16.mxu0 0
        %1145 = vmatpush1.bf16.msra.mxu0 0
        %1146 = vmatprep.subr.bf16.mxu0 0
        %1147 = vmatpush1.bf16.msra.mxu0 0
        %1148 = vmatprep.subr.bf16.mxu0 0
        %1149 = vmatpush1.bf16.msra.mxu0 0
        %1150 = vmatprep.subr.bf16.mxu0 0
        %1151 = vmatpush1.bf16.msra.mxu0 0
        %1152 = vmatprep.subr.bf16.mxu0 0
        %1153 = vmatpush1.bf16.msra.mxu0 0
        %1154 = vmatprep.subr.bf16.mxu0 0
        %1155 = vmatpush1.bf16.msra.mxu0 0
        %1156 = vmatprep.subr.bf16.mxu0 0
        %1157 = vmatpush1.bf16.msra.mxu0 0
        %1158 = vmatprep.subr.bf16.mxu0 0
        %1159 = vmatpush1.bf16.msra.mxu0 0
        %1160 = vmatprep.subr.bf16.mxu0 0
        %1161 = vmatpush1.bf16.msra.mxu0 0
        %1162 = vmatprep.subr.bf16.mxu0 0
        %1163 = vmatpush1.bf16.msra.mxu0 0
        %1164 = vmatprep.subr.bf16.mxu0 0
        %1165 = vmatpush1.bf16.msra.mxu0 0
        %1166 = vmatprep.mubr.bf16.mxu0 0
        %1167 = vmatmul.mubr.bf16.gmra.mrb[0].mxu0 %v359
        %v1168 = vpop.f32.mrb[0].mxu0
        %v1169 = vadd.f32 0.0, %v1168
        %v1170 = vpop.f32.mrb[0].mxu0
        %v1171 = vpop.f32.mrb[0].mxu0
        %v1172 = vadd.f32 0.0, %v1171
        %v1173 = vpop.f32.mrb[0].mxu0
        %1174 = vmatprep.mubr.bf16.mxu0 0
        %1175 = vmatmul.mubr.bf16.gmra.mrb[0].mxu0 %v362
        %v1176 = vpop.f32.mrb[0].mxu0
        %v1177 = vadd.f32 0.0, %v1176
        %v1178 = vpop.f32.mrb[0].mxu0
        %v1179 = vpop.f32.mrb[0].mxu0
        %v1180 = vadd.f32 0.0, %v1179
        %v1181 = vpop.f32.mrb[0].mxu0
        %1182 = vdwg.mxu0
        %v1185 = vunpack.c.l.b16 %v323
        %v1186 = vunpack.c.l.b16 %v324
        %v1187 = vpack.c.b16 %v1186, %v1185
        %1189 = vmatprep.subr.bf16.mxu0 0
        %1190 = vmatpush1.bf16.msra.mxu0 %v1187
        %1191 = vmatprep.subr.bf16.mxu0 0
        %1192 = vmatpush1.bf16.msra.mxu0 0
        %1193 = vmatprep.subr.bf16.mxu0 0
        %1194 = vmatpush1.bf16.msra.mxu0 0
        %1195 = vmatprep.subr.bf16.mxu0 0
        %1196 = vmatpush1.bf16.msra.mxu0 0
        %1197 = vmatprep.subr.bf16.mxu0 0
        %1198 = vmatpush1.bf16.msra.mxu0 0
        %1199 = vmatprep.subr.bf16.mxu0 0
        %1200 = vmatpush1.bf16.msra.mxu0 0
        %1201 = vmatprep.subr.bf16.mxu0 0
        %1202 = vmatpush1.bf16.msra.mxu0 0
        %1203 = vmatprep.subr.bf16.mxu0 0
        %1204 = vmatpush1.bf16.msra.mxu0 0
        %1205 = vmatprep.subr.bf16.mxu0 0
        %1206 = vmatpush1.bf16.msra.mxu0 0
        %1207 = vmatprep.subr.bf16.mxu0 0
        %1208 = vmatpush1.bf16.msra.mxu0 0
        %1209 = vmatprep.subr.bf16.mxu0 0
        %1210 = vmatpush1.bf16.msra.mxu0 0
        %1211 = vmatprep.subr.bf16.mxu0 0
        %1212 = vmatpush1.bf16.msra.mxu0 0
        %1213 = vmatprep.subr.bf16.mxu0 0
        %1214 = vmatpush1.bf16.msra.mxu0 0
        %1215 = vmatprep.subr.bf16.mxu0 0
        %1216 = vmatpush1.bf16.msra.mxu0 0
        %1217 = vmatprep.subr.bf16.mxu0 0
        %1218 = vmatpush1.bf16.msra.mxu0 0
        %1219 = vmatprep.subr.bf16.mxu0 0
        %1220 = vmatpush1.bf16.msra.mxu0 0
        %1221 = vmatprep.mubr.bf16.mxu0 0
        %1222 = vmatmul.mubr.bf16.gmra.mrb[0].mxu0 %v359
        %v1223 = vpop.f32.mrb[0].mxu0
        %v1224 = vadd.f32 0.0, %v1223
        %v1225 = vpop.f32.mrb[0].mxu0
        %v1226 = vpop.f32.mrb[0].mxu0
        %v1227 = vadd.f32 0.0, %v1226
        %v1228 = vpop.f32.mrb[0].mxu0
        %1229 = vmatprep.mubr.bf16.mxu0 0
        %1230 = vmatmul.mubr.bf16.gmra.mrb[0].mxu0 %v362
        %v1231 = vpop.f32.mrb[0].mxu0
        %v1232 = vadd.f32 0.0, %v1231
        %v1233 = vpop.f32.mrb[0].mxu0
        %v1234 = vpop.f32.mrb[0].mxu0
        %v1235 = vadd.f32 0.0, %v1234
        %v1236 = vpop.f32.mrb[0].mxu0
        %1237 = vdwg.mxu0
        %v1240 = vunpack.c.l.b16 %v325
        %v1241 = vunpack.c.l.b16 %v326
        %v1242 = vpack.c.b16 %v1241, %v1240
        %1244 = vmatprep.subr.bf16.mxu0 0
        %1245 = vmatpush1.bf16.msra.mxu0 %v1242
        %1246 = vmatprep.subr.bf16.mxu0 0
        %1247 = vmatpush1.bf16.msra.mxu0 0
        %1248 = vmatprep.subr.bf16.mxu0 0
        %1249 = vmatpush1.bf16.msra.mxu0 0
        %1250 = vmatprep.subr.bf16.mxu0 0
        %1251 = vmatpush1.bf16.msra.mxu0 0
        %1252 = vmatprep.subr.bf16.mxu0 0
        %1253 = vmatpush1.bf16.msra.mxu0 0
        %1254 = vmatprep.subr.bf16.mxu0 0
        %1255 = vmatpush1.bf16.msra.mxu0 0
        %1256 = vmatprep.subr.bf16.mxu0 0
        %1257 = vmatpush1.bf16.msra.mxu0 0
        %1258 = vmatprep.subr.bf16.mxu0 0
        %1259 = vmatpush1.bf16.msra.mxu0 0
        %1260 = vmatprep.subr.bf16.mxu0 0
        %1261 = vmatpush1.bf16.msra.mxu0 0
        %1262 = vmatprep.subr.bf16.mxu0 0
        %1263 = vmatpush1.bf16.msra.mxu0 0
        %1264 = vmatprep.subr.bf16.mxu0 0
        %1265 = vmatpush1.bf16.msra.mxu0 0
        %1266 = vmatprep.subr.bf16.mxu0 0
        %1267 = vmatpush1.bf16.msra.mxu0 0
        %1268 = vmatprep.subr.bf16.mxu0 0
        %1269 = vmatpush1.bf16.msra.mxu0 0
        %1270 = vmatprep.subr.bf16.mxu0 0
        %1271 = vmatpush1.bf16.msra.mxu0 0
        %1272 = vmatprep.subr.bf16.mxu0 0
        %1273 = vmatpush1.bf16.msra.mxu0 0
        %1274 = vmatprep.subr.bf16.mxu0 0
        %1275 = vmatpush1.bf16.msra.mxu0 0
        %1276 = vmatprep.mubr.bf16.mxu0 0
        %1277 = vmatmul.mubr.bf16.gmra.mrb[0].mxu0 %v359
        %v1278 = vpop.f32.mrb[0].mxu0
        %v1279 = vadd.f32 0.0, %v1278
        %v1280 = vpop.f32.mrb[0].mxu0
        %v1281 = vpop.f32.mrb[0].mxu0
        %v1282 = vadd.f32 0.0, %v1281
        %v1283 = vpop.f32.mrb[0].mxu0
        %1284 = vmatprep.mubr.bf16.mxu0 0
        %1285 = vmatmul.mubr.bf16.gmra.mrb[0].mxu0 %v362
        %v1286 = vpop.f32.mrb[0].mxu0
        %v1287 = vadd.f32 0.0, %v1286
        %v1288 = vpop.f32.mrb[0].mxu0
        %v1289 = vpop.f32.mrb[0].mxu0
        %v1290 = vadd.f32 0.0, %v1289
        %v1291 = vpop.f32.mrb[0].mxu0
        %1292 = vdwg.mxu0
        %v1295 = vunpack.c.l.b16 %v327
        %v1296 = vunpack.c.l.b16 %v328
        %v1297 = vpack.c.b16 %v1296, %v1295
        %1299 = vmatprep.subr.bf16.mxu0 0
        %1300 = vmatpush1.bf16.msra.mxu0 %v1297
        %1301 = vmatprep.subr.bf16.mxu0 0
        %1302 = vmatpush1.bf16.msra.mxu0 0
        %1303 = vmatprep.subr.bf16.mxu0 0
        %1304 = vmatpush1.bf16.msra.mxu0 0
        %1305 = vmatprep.subr.bf16.mxu0 0
        %1306 = vmatpush1.bf16.msra.mxu0 0
        %1307 = vmatprep.subr.bf16.mxu0 0
        %1308 = vmatpush1.bf16.msra.mxu0 0
        %1309 = vmatprep.subr.bf16.mxu0 0
        %1310 = vmatpush1.bf16.msra.mxu0 0
        %1311 = vmatprep.subr.bf16.mxu0 0
        %1312 = vmatpush1.bf16.msra.mxu0 0
        %1313 = vmatprep.subr.bf16.mxu0 0
        %1314 = vmatpush1.bf16.msra.mxu0 0
        %1315 = vmatprep.subr.bf16.mxu0 0
        %1316 = vmatpush1.bf16.msra.mxu0 0
        %1317 = vmatprep.subr.bf16.mxu0 0
        %1318 = vmatpush1.bf16.msra.mxu0 0
        %1319 = vmatprep.subr.bf16.mxu0 0
        %1320 = vmatpush1.bf16.msra.mxu0 0
        %1321 = vmatprep.subr.bf16.mxu0 0
        %1322 = vmatpush1.bf16.msra.mxu0 0
        %1323 = vmatprep.subr.bf16.mxu0 0
        %1324 = vmatpush1.bf16.msra.mxu0 0
        %1325 = vmatprep.subr.bf16.mxu0 0
        %1326 = vmatpush1.bf16.msra.mxu0 0
        %1327 = vmatprep.subr.bf16.mxu0 0
        %1328 = vmatpush1.bf16.msra.mxu0 0
        %1329 = vmatprep.subr.bf16.mxu0 0
        %1330 = vmatpush1.bf16.msra.mxu0 0
        %1331 = vmatprep.mubr.bf16.mxu0 0
        %1332 = vmatmul.mubr.bf16.gmra.mrb[0].mxu0 %v359
        %v1333 = vpop.f32.mrb[0].mxu0
        %v1334 = vadd.f32 0.0, %v1333
        %v1335 = vpop.f32.mrb[0].mxu0
        %v1336 = vpop.f32.mrb[0].mxu0
        %v1337 = vadd.f32 0.0, %v1336
        %v1338 = vpop.f32.mrb[0].mxu0
        %1339 = vmatprep.mubr.bf16.mxu0 0
        %1340 = vmatmul.mubr.bf16.gmra.mrb[0].mxu0 %v362
        %v1341 = vpop.f32.mrb[0].mxu0
        %v1342 = vadd.f32 0.0, %v1341
        %v1343 = vpop.f32.mrb[0].mxu0
        %v1344 = vpop.f32.mrb[0].mxu0
        %v1345 = vadd.f32 0.0, %v1344
        %v1346 = vpop.f32.mrb[0].mxu0
        %1347 = vdwg.mxu0
        %v1350 = vunpack.c.l.b16 %v329
        %v1351 = vunpack.c.l.b16 %v330
        %v1352 = vpack.c.b16 %v1351, %v1350
        %1354 = vmatprep.subr.bf16.mxu0 0
        %1355 = vmatpush1.bf16.msra.mxu0 %v1352
        %1356 = vmatprep.subr.bf16.mxu0 0
        %1357 = vmatpush1.bf16.msra.mxu0 0
        %1358 = vmatprep.subr.bf16.mxu0 0
        %1359 = vmatpush1.bf16.msra.mxu0 0
        %1360 = vmatprep.subr.bf16.mxu0 0
        %1361 = vmatpush1.bf16.msra.mxu0 0
        %1362 = vmatprep.subr.bf16.mxu0 0
        %1363 = vmatpush1.bf16.msra.mxu0 0
        %1364 = vmatprep.subr.bf16.mxu0 0
        %1365 = vmatpush1.bf16.msra.mxu0 0
        %1366 = vmatprep.subr.bf16.mxu0 0
        %1367 = vmatpush1.bf16.msra.mxu0 0
        %1368 = vmatprep.subr.bf16.mxu0 0
        %1369 = vmatpush1.bf16.msra.mxu0 0
        %1370 = vmatprep.subr.bf16.mxu0 0
        %1371 = vmatpush1.bf16.msra.mxu0 0
        %1372 = vmatprep.subr.bf16.mxu0 0
        %1373 = vmatpush1.bf16.msra.mxu0 0
        %1374 = vmatprep.subr.bf16.mxu0 0
        %1375 = vmatpush1.bf16.msra.mxu0 0
        %1376 = vmatprep.subr.bf16.mxu0 0
        %1377 = vmatpush1.bf16.msra.mxu0 0
        %1378 = vmatprep.subr.bf16.mxu0 0
        %1379 = vmatpush1.bf16.msra.mxu0 0
        %1380 = vmatprep.subr.bf16.mxu0 0
        %1381 = vmatpush1.bf16.msra.mxu0 0
        %1382 = vmatprep.subr.bf16.mxu0 0
        %1383 = vmatpush1.bf16.msra.mxu0 0
        %1384 = vmatprep.subr.bf16.mxu0 0
        %1385 = vmatpush1.bf16.msra.mxu0 0
        %1386 = vmatprep.mubr.bf16.mxu0 0
        %1387 = vmatmul.mubr.bf16.gmra.mrb[0].mxu0 %v359
        %v1388 = vpop.f32.mrb[0].mxu0
        %v1389 = vadd.f32 0.0, %v1388
        %v1390 = vpop.f32.mrb[0].mxu0
        %v1391 = vpop.f32.mrb[0].mxu0
        %v1392 = vadd.f32 0.0, %v1391
        %v1393 = vpop.f32.mrb[0].mxu0
        %1394 = vmatprep.mubr.bf16.mxu0 0
        %1395 = vmatmul.mubr.bf16.gmra.mrb[0].mxu0 %v362
        %v1396 = vpop.f32.mrb[0].mxu0
        %v1397 = vadd.f32 0.0, %v1396
        %v1398 = vpop.f32.mrb[0].mxu0
        %v1399 = vpop.f32.mrb[0].mxu0
        %v1400 = vadd.f32 0.0, %v1399
        %v1401 = vpop.f32.mrb[0].mxu0
        %1402 = vdwg.mxu0
        %v1403 = vpack.c.bf16 %v402, %v399
        %v1404 = vpack.c.bf16 %v410, %v407
        %v1405 = vpack.c.bf16 %v457, %v454
        %v1406 = vpack.c.bf16 %v465, %v462
        %v1407 = vpack.c.bf16 %v512, %v509
        %v1408 = vpack.c.bf16 %v520, %v517
        %v1409 = vpack.c.bf16 %v567, %v564
        %v1410 = vpack.c.bf16 %v575, %v572
        %v1411 = vpack.c.bf16 %v622, %v619
        %v1412 = vpack.c.bf16 %v630, %v627
        %v1413 = vpack.c.bf16 %v677, %v674
        %v1414 = vpack.c.bf16 %v685, %v682
        %v1415 = vpack.c.bf16 %v732, %v729
        %v1416 = vpack.c.bf16 %v740, %v737
        %v1417 = vpack.c.bf16 %v787, %v784
        %v1418 = vpack.c.bf16 %v795, %v792
        %v1419 = vpack.c.bf16 %v842, %v839
        %v1420 = vpack.c.bf16 %v850, %v847
        %v1421 = vpack.c.bf16 %v897, %v894
        %v1422 = vpack.c.bf16 %v905, %v902
        %v1423 = vpack.c.bf16 %v952, %v949
        %v1424 = vpack.c.bf16 %v960, %v957
        %v1425 = vpack.c.bf16 %v1007, %v1004
        %v1426 = vpack.c.bf16 %v1015, %v1012
        %v1427 = vpack.c.bf16 %v1062, %v1059
        %v1428 = vpack.c.bf16 %v1070, %v1067
        %v1429 = vpack.c.bf16 %v1117, %v1114
        %v1430 = vpack.c.bf16 %v1125, %v1122
        %v1431 = vpack.c.bf16 %v1172, %v1169
        %v1432 = vpack.c.bf16 %v1180, %v1177
        %v1433 = vpack.c.bf16 %v1227, %v1224
        %v1434 = vpack.c.bf16 %v1235, %v1232
        %v1435 = vpack.c.bf16 %v1282, %v1279
        %v1436 = vpack.c.bf16 %v1290, %v1287
        %v1437 = vpack.c.bf16 %v1337, %v1334
        %v1438 = vpack.c.bf16 %v1345, %v1342
        %v1439 = vpack.c.bf16 %v1392, %v1389
        %v1440 = vpack.c.bf16 %v1400, %v1397
        %v1443 = vunpack.c.l.b16 %v335
        %v1444 = vunpack.c.l.b16 %v336
        %v1445 = vpack.c.b16 %v1444, %v1443
        %v1448 = vsel %vm357, %v1403, 0
        %v1451 = vsel %vm357, %v1404, 0
        %v1454 = vsel %vm357, %v1405, 0
        %v1457 = vsel %vm357, %v1406, 0
        %v1460 = vsel %vm357, %v1407, 0
        %v1463 = vsel %vm357, %v1408, 0
        %v1466 = vsel %vm357, %v1409, 0
        %v1469 = vsel %vm357, %v1410, 0
        %v1472 = vsel %vm357, %v1411, 0
        %v1475 = vsel %vm357, %v1412, 0
        %v1478 = vsel %vm357, %v1413, 0
        %v1481 = vsel %vm357, %v1414, 0
        %v1484 = vsel %vm357, %v1415, 0
        %v1487 = vsel %vm357, %v1416, 0
        %v1490 = vsel %vm357, %v1417, 0
        %v1493 = vsel %vm357, %v1418, 0
        %v1496 = vsel %vm357, %v1419, 0
        %v1499 = vsel %vm357, %v1420, 0
        %v1502 = vsel %vm357, %v1421, 0
        %v1505 = vsel %vm357, %v1422, 0
        %v1508 = vsel %vm357, %v1423, 0
        %v1511 = vsel %vm357, %v1424, 0
        %v1514 = vsel %vm357, %v1425, 0
        %v1517 = vsel %vm357, %v1426, 0
        %v1520 = vsel %vm357, %v1427, 0
        %v1523 = vsel %vm357, %v1428, 0
        %v1526 = vsel %vm357, %v1429, 0
        %v1529 = vsel %vm357, %v1430, 0
        %v1532 = vsel %vm357, %v1431, 0
        %v1535 = vsel %vm357, %v1432, 0
        %v1538 = vsel %vm357, %v1433, 0
        %v1541 = vsel %vm357, %v1434, 0
        %v1544 = vsel %vm357, %v1435, 0
        %v1547 = vsel %vm357, %v1436, 0
        %v1550 = vsel %vm357, %v1437, 0
        %v1553 = vsel %vm357, %v1438, 0
        %v1556 = vsel %vm357, %v1439, 0
        %v1559 = vsel %vm357, %v1440, 0
        %1561 = vmatprep.subr.bf16.mxu0 0
        %1562 = vmatpush1.bf16.msra.mxu0 %v1445
        %1563 = vmatprep.subr.bf16.mxu0 0
        %1564 = vmatpush1.bf16.msra.mxu0 0
        %1565 = vmatprep.subr.bf16.mxu0 0
        %1566 = vmatpush1.bf16.msra.mxu0 0
        %1567 = vmatprep.subr.bf16.mxu0 0
        %1568 = vmatpush1.bf16.msra.mxu0 0
        %1569 = vmatprep.subr.bf16.mxu0 0
        %1570 = vmatpush1.bf16.msra.mxu0 0
        %1571 = vmatprep.subr.bf16.mxu0 0
        %1572 = vmatpush1.bf16.msra.mxu0 0
        %1573 = vmatprep.subr.bf16.mxu0 0
        %1574 = vmatpush1.bf16.msra.mxu0 0
        %1575 = vmatprep.subr.bf16.mxu0 0
        %1576 = vmatpush1.bf16.msra.mxu0 0
        %1577 = vmatprep.subr.bf16.mxu0 0
        %1578 = vmatpush1.bf16.msra.mxu0 0
        %1579 = vmatprep.subr.bf16.mxu0 0
        %1580 = vmatpush1.bf16.msra.mxu0 0
        %1581 = vmatprep.subr.bf16.mxu0 0
        %1582 = vmatpush1.bf16.msra.mxu0 0
        %1583 = vmatprep.subr.bf16.mxu0 0
        %1584 = vmatpush1.bf16.msra.mxu0 0
        %1585 = vmatprep.subr.bf16.mxu0 0
        %1586 = vmatpush1.bf16.msra.mxu0 0
        %1587 = vmatprep.subr.bf16.mxu0 0
        %1588 = vmatpush1.bf16.msra.mxu0 0
        %1589 = vmatprep.subr.bf16.mxu0 0
        %1590 = vmatpush1.bf16.msra.mxu0 0
        %1591 = vmatprep.subr.bf16.mxu0 0
        %1592 = vmatpush1.bf16.msra.mxu0 0
        %1593 = vmatprep.mubr.bf16.mxu0 0
        %1594 = vmatmul.mubr.bf16.gmra.mrb[0].mxu0 %v1448
        %v1595 = vpop.f32.mrb[0].mxu0
        %v1596 = vadd.f32 0.0, %v1595
        %v1597 = vpop.f32.mrb[0].mxu0
        %v1598 = vpop.f32.mrb[0].mxu0
        %v1599 = vadd.f32 0.0, %v1598
        %v1600 = vpop.f32.mrb[0].mxu0
        %1601 = vmatprep.mubr.bf16.mxu0 0
        %1602 = vmatmul.mubr.bf16.gmra.mrb[0].mxu0 %v1451
        %v1603 = vpop.f32.mrb[0].mxu0
        %v1604 = vadd.f32 0.0, %v1603
        %v1605 = vpop.f32.mrb[0].mxu0
        %v1606 = vpop.f32.mrb[0].mxu0
        %v1607 = vadd.f32 0.0, %v1606
        %v1608 = vpop.f32.mrb[0].mxu0
        %1609 = vmatprep.mubr.bf16.mxu0 0
        %1610 = vmatmul.mubr.bf16.gmra.mrb[0].mxu0 %v1454
        %v1611 = vpop.f32.mrb[0].mxu0
        %v1612 = vadd.f32 0.0, %v1611
        %v1613 = vpop.f32.mrb[0].mxu0
        %v1614 = vpop.f32.mrb[0].mxu0
        %v1615 = vadd.f32 0.0, %v1614
        %v1616 = vpop.f32.mrb[0].mxu0
        %1617 = vmatprep.mubr.bf16.mxu0 0
        %1618 = vmatmul.mubr.bf16.gmra.mrb[0].mxu0 %v1457
        %v1619 = vpop.f32.mrb[0].mxu0
        %v1620 = vadd.f32 0.0, %v1619
        %v1621 = vpop.f32.mrb[0].mxu0
        %v1622 = vpop.f32.mrb[0].mxu0
        %v1623 = vadd.f32 0.0, %v1622
        %v1624 = vpop.f32.mrb[0].mxu0
        %1625 = vmatprep.mubr.bf16.mxu0 0
        %1626 = vmatmul.mubr.bf16.gmra.mrb[0].mxu0 %v1460
        %v1627 = vpop.f32.mrb[0].mxu0
        %v1628 = vadd.f32 0.0, %v1627
        %v1629 = vpop.f32.mrb[0].mxu0
        %v1630 = vpop.f32.mrb[0].mxu0
        %v1631 = vadd.f32 0.0, %v1630
        %v1632 = vpop.f32.mrb[0].mxu0
        %1633 = vmatprep.mubr.bf16.mxu0 0
        %1634 = vmatmul.mubr.bf16.gmra.mrb[0].mxu0 %v1463
        %v1635 = vpop.f32.mrb[0].mxu0
        %v1636 = vadd.f32 0.0, %v1635
        %v1637 = vpop.f32.mrb[0].mxu0
        %v1638 = vpop.f32.mrb[0].mxu0
        %v1639 = vadd.f32 0.0, %v1638
        %v1640 = vpop.f32.mrb[0].mxu0
        %1641 = vmatprep.mubr.bf16.mxu0 0
        %1642 = vmatmul.mubr.bf16.gmra.mrb[0].mxu0 %v1466
        %v1643 = vpop.f32.mrb[0].mxu0
        %v1644 = vadd.f32 0.0, %v1643
        %v1645 = vpop.f32.mrb[0].mxu0
        %v1646 = vpop.f32.mrb[0].mxu0
        %v1647 = vadd.f32 0.0, %v1646
        %v1648 = vpop.f32.mrb[0].mxu0
        %1649 = vmatprep.mubr.bf16.mxu0 0
        %1650 = vmatmul.mubr.bf16.gmra.mrb[0].mxu0 %v1469
        %v1651 = vpop.f32.mrb[0].mxu0
        %v1652 = vadd.f32 0.0, %v1651
        %v1653 = vpop.f32.mrb[0].mxu0
        %v1654 = vpop.f32.mrb[0].mxu0
        %v1655 = vadd.f32 0.0, %v1654
        %v1656 = vpop.f32.mrb[0].mxu0
        %1657 = vmatprep.mubr.bf16.mxu0 0
        %1658 = vmatmul.mubr.bf16.gmra.mrb[0].mxu0 %v1472
        %v1659 = vpop.f32.mrb[0].mxu0
        %v1660 = vadd.f32 0.0, %v1659
        %v1661 = vpop.f32.mrb[0].mxu0
        %v1662 = vpop.f32.mrb[0].mxu0
        %v1663 = vadd.f32 0.0, %v1662
        %v1664 = vpop.f32.mrb[0].mxu0
        %1665 = vmatprep.mubr.bf16.mxu0 0
        %1666 = vmatmul.mubr.bf16.gmra.mrb[0].mxu0 %v1475
        %v1667 = vpop.f32.mrb[0].mxu0
        %v1668 = vadd.f32 0.0, %v1667
        %v1669 = vpop.f32.mrb[0].mxu0
        %v1670 = vpop.f32.mrb[0].mxu0
        %v1671 = vadd.f32 0.0, %v1670
        %v1672 = vpop.f32.mrb[0].mxu0
        %1673 = vmatprep.mubr.bf16.mxu0 0
        %1674 = vmatmul.mubr.bf16.gmra.mrb[0].mxu0 %v1478
        %v1675 = vpop.f32.mrb[0].mxu0
        %v1676 = vadd.f32 0.0, %v1675
        %v1677 = vpop.f32.mrb[0].mxu0
        %v1678 = vpop.f32.mrb[0].mxu0
        %v1679 = vadd.f32 0.0, %v1678
        %v1680 = vpop.f32.mrb[0].mxu0
        %1681 = vmatprep.mubr.bf16.mxu0 0
        %1682 = vmatmul.mubr.bf16.gmra.mrb[0].mxu0 %v1481
        %v1683 = vpop.f32.mrb[0].mxu0
        %v1684 = vadd.f32 0.0, %v1683
        %v1685 = vpop.f32.mrb[0].mxu0
        %v1686 = vpop.f32.mrb[0].mxu0
        %v1687 = vadd.f32 0.0, %v1686
        %v1688 = vpop.f32.mrb[0].mxu0
        %1689 = vmatprep.mubr.bf16.mxu0 0
        %1690 = vmatmul.mubr.bf16.gmra.mrb[0].mxu0 %v1484
        %v1691 = vpop.f32.mrb[0].mxu0
        %v1692 = vadd.f32 0.0, %v1691
        %v1693 = vpop.f32.mrb[0].mxu0
        %v1694 = vpop.f32.mrb[0].mxu0
        %v1695 = vadd.f32 0.0, %v1694
        %v1696 = vpop.f32.mrb[0].mxu0
        %1697 = vmatprep.mubr.bf16.mxu0 0
        %1698 = vmatmul.mubr.bf16.gmra.mrb[0].mxu0 %v1487
        %v1699 = vpop.f32.mrb[0].mxu0
        %v1700 = vadd.f32 0.0, %v1699
        %v1701 = vpop.f32.mrb[0].mxu0
        %v1702 = vpop.f32.mrb[0].mxu0
        %v1703 = vadd.f32 0.0, %v1702
        %v1704 = vpop.f32.mrb[0].mxu0
        %1705 = vmatprep.mubr.bf16.mxu0 0
        %1706 = vmatmul.mubr.bf16.gmra.mrb[0].mxu0 %v1490
        %v1707 = vpop.f32.mrb[0].mxu0
        %v1708 = vadd.f32 0.0, %v1707
        %v1709 = vpop.f32.mrb[0].mxu0
        %v1710 = vpop.f32.mrb[0].mxu0
        %v1711 = vadd.f32 0.0, %v1710
        %v1712 = vpop.f32.mrb[0].mxu0
        %1713 = vmatprep.mubr.bf16.mxu0 0
        %1714 = vmatmul.mubr.bf16.gmra.mrb[0].mxu0 %v1493
        %v1715 = vpop.f32.mrb[0].mxu0
        %v1716 = vadd.f32 0.0, %v1715
        %v1717 = vpop.f32.mrb[0].mxu0
        %v1718 = vpop.f32.mrb[0].mxu0
        %v1719 = vadd.f32 0.0, %v1718
        %v1720 = vpop.f32.mrb[0].mxu0
        %1721 = vmatprep.mubr.bf16.mxu0 0
        %1722 = vmatmul.mubr.bf16.gmra.mrb[0].mxu0 %v1496
        %v1723 = vpop.f32.mrb[0].mxu0
        %v1724 = vadd.f32 0.0, %v1723
        %v1725 = vpop.f32.mrb[0].mxu0
        %v1726 = vpop.f32.mrb[0].mxu0
        %v1727 = vadd.f32 0.0, %v1726
        %v1728 = vpop.f32.mrb[0].mxu0
        %1729 = vmatprep.mubr.bf16.mxu0 0
        %1730 = vmatmul.mubr.bf16.gmra.mrb[0].mxu0 %v1499
        %v1731 = vpop.f32.mrb[0].mxu0
        %v1732 = vadd.f32 0.0, %v1731
        %v1733 = vpop.f32.mrb[0].mxu0
        %v1734 = vpop.f32.mrb[0].mxu0
        %v1735 = vadd.f32 0.0, %v1734
        %v1736 = vpop.f32.mrb[0].mxu0
        %1737 = vmatprep.mubr.bf16.mxu0 0
        %1738 = vmatmul.mubr.bf16.gmra.mrb[0].mxu0 %v1502
        %v1739 = vpop.f32.mrb[0].mxu0
        %v1740 = vadd.f32 0.0, %v1739
        %v1741 = vpop.f32.mrb[0].mxu0
        %v1742 = vpop.f32.mrb[0].mxu0
        %v1743 = vadd.f32 0.0, %v1742
        %v1744 = vpop.f32.mrb[0].mxu0
        %1745 = vmatprep.mubr.bf16.mxu0 0
        %1746 = vmatmul.mubr.bf16.gmra.mrb[0].mxu0 %v1505
        %v1747 = vpop.f32.mrb[0].mxu0
        %v1748 = vadd.f32 0.0, %v1747
        %v1749 = vpop.f32.mrb[0].mxu0
        %v1750 = vpop.f32.mrb[0].mxu0
        %v1751 = vadd.f32 0.0, %v1750
        %v1752 = vpop.f32.mrb[0].mxu0
        %1753 = vmatprep.mubr.bf16.mxu0 0
        %1754 = vmatmul.mubr.bf16.gmra.mrb[0].mxu0 %v1508
        %v1755 = vpop.f32.mrb[0].mxu0
        %v1756 = vadd.f32 0.0, %v1755
        %v1757 = vpop.f32.mrb[0].mxu0
        %v1758 = vpop.f32.mrb[0].mxu0
        %v1759 = vadd.f32 0.0, %v1758
        %v1760 = vpop.f32.mrb[0].mxu0
        %1761 = vmatprep.mubr.bf16.mxu0 0
        %1762 = vmatmul.mubr.bf16.gmra.mrb[0].mxu0 %v1511
        %v1763 = vpop.f32.mrb[0].mxu0
        %v1764 = vadd.f32 0.0, %v1763
        %v1765 = vpop.f32.mrb[0].mxu0
        %v1766 = vpop.f32.mrb[0].mxu0
        %v1767 = vadd.f32 0.0, %v1766
        %v1768 = vpop.f32.mrb[0].mxu0
        %1769 = vmatprep.mubr.bf16.mxu0 0
        %1770 = vmatmul.mubr.bf16.gmra.mrb[0].mxu0 %v1514
        %v1771 = vpop.f32.mrb[0].mxu0
        %v1772 = vadd.f32 0.0, %v1771
        %v1773 = vpop.f32.mrb[0].mxu0
        %v1774 = vpop.f32.mrb[0].mxu0
        %v1775 = vadd.f32 0.0, %v1774
        %v1776 = vpop.f32.mrb[0].mxu0
        %1777 = vmatprep.mubr.bf16.mxu0 0
        %1778 = vmatmul.mubr.bf16.gmra.mrb[0].mxu0 %v1517
        %v1779 = vpop.f32.mrb[0].mxu0
        %v1780 = vadd.f32 0.0, %v1779
        %v1781 = vpop.f32.mrb[0].mxu0
        %v1782 = vpop.f32.mrb[0].mxu0
        %v1783 = vadd.f32 0.0, %v1782
        %v1784 = vpop.f32.mrb[0].mxu0
        %1785 = vmatprep.mubr.bf16.mxu0 0
        %1786 = vmatmul.mubr.bf16.gmra.mrb[0].mxu0 %v1520
        %v1787 = vpop.f32.mrb[0].mxu0
        %v1788 = vadd.f32 0.0, %v1787
        %v1789 = vpop.f32.mrb[0].mxu0
        %v1790 = vpop.f32.mrb[0].mxu0
        %v1791 = vadd.f32 0.0, %v1790
        %v1792 = vpop.f32.mrb[0].mxu0
        %1793 = vmatprep.mubr.bf16.mxu0 0
        %1794 = vmatmul.mubr.bf16.gmra.mrb[0].mxu0 %v1523
        %v1795 = vpop.f32.mrb[0].mxu0
        %v1796 = vadd.f32 0.0, %v1795
        %v1797 = vpop.f32.mrb[0].mxu0
        %v1798 = vpop.f32.mrb[0].mxu0
        %v1799 = vadd.f32 0.0, %v1798
        %v1800 = vpop.f32.mrb[0].mxu0
        %1801 = vmatprep.mubr.bf16.mxu0 0
        %1802 = vmatmul.mubr.bf16.gmra.mrb[0].mxu0 %v1526
        %v1803 = vpop.f32.mrb[0].mxu0
        %v1804 = vadd.f32 0.0, %v1803
        %v1805 = vpop.f32.mrb[0].mxu0
        %v1806 = vpop.f32.mrb[0].mxu0
        %v1807 = vadd.f32 0.0, %v1806
        %v1808 = vpop.f32.mrb[0].mxu0
        %1809 = vmatprep.mubr.bf16.mxu0 0
        %1810 = vmatmul.mubr.bf16.gmra.mrb[0].mxu0 %v1529
        %v1811 = vpop.f32.mrb[0].mxu0
        %v1812 = vadd.f32 0.0, %v1811
        %v1813 = vpop.f32.mrb[0].mxu0
        %v1814 = vpop.f32.mrb[0].mxu0
        %v1815 = vadd.f32 0.0, %v1814
        %v1816 = vpop.f32.mrb[0].mxu0
        %1817 = vmatprep.mubr.bf16.mxu0 0
        %1818 = vmatmul.mubr.bf16.gmra.mrb[0].mxu0 %v1532
        %v1819 = vpop.f32.mrb[0].mxu0
        %v1820 = vadd.f32 0.0, %v1819
        %v1821 = vpop.f32.mrb[0].mxu0
        %v1822 = vpop.f32.mrb[0].mxu0
        %v1823 = vadd.f32 0.0, %v1822
        %v1824 = vpop.f32.mrb[0].mxu0
        %1825 = vmatprep.mubr.bf16.mxu0 0
        %1826 = vmatmul.mubr.bf16.gmra.mrb[0].mxu0 %v1535
        %v1827 = vpop.f32.mrb[0].mxu0
        %v1828 = vadd.f32 0.0, %v1827
        %v1829 = vpop.f32.mrb[0].mxu0
        %v1830 = vpop.f32.mrb[0].mxu0
        %v1831 = vadd.f32 0.0, %v1830
        %v1832 = vpop.f32.mrb[0].mxu0
        %1833 = vmatprep.mubr.bf16.mxu0 0
        %1834 = vmatmul.mubr.bf16.gmra.mrb[0].mxu0 %v1538
        %v1835 = vpop.f32.mrb[0].mxu0
        %v1836 = vadd.f32 0.0, %v1835
        %v1837 = vpop.f32.mrb[0].mxu0
        %v1838 = vpop.f32.mrb[0].mxu0
        %v1839 = vadd.f32 0.0, %v1838
        %v1840 = vpop.f32.mrb[0].mxu0
        %1841 = vmatprep.mubr.bf16.mxu0 0
        %1842 = vmatmul.mubr.bf16.gmra.mrb[0].mxu0 %v1541
        %v1843 = vpop.f32.mrb[0].mxu0
        %v1844 = vadd.f32 0.0, %v1843
        %v1845 = vpop.f32.mrb[0].mxu0
        %v1846 = vpop.f32.mrb[0].mxu0
        %v1847 = vadd.f32 0.0, %v1846
        %v1848 = vpop.f32.mrb[0].mxu0
        %1849 = vmatprep.mubr.bf16.mxu0 0
        %1850 = vmatmul.mubr.bf16.gmra.mrb[0].mxu0 %v1544
        %v1851 = vpop.f32.mrb[0].mxu0
        %v1852 = vadd.f32 0.0, %v1851
        %v1853 = vpop.f32.mrb[0].mxu0
        %v1854 = vpop.f32.mrb[0].mxu0
        %v1855 = vadd.f32 0.0, %v1854
        %v1856 = vpop.f32.mrb[0].mxu0
        %1857 = vmatprep.mubr.bf16.mxu0 0
        %1858 = vmatmul.mubr.bf16.gmra.mrb[0].mxu0 %v1547
        %v1859 = vpop.f32.mrb[0].mxu0
        %v1860 = vadd.f32 0.0, %v1859
        %v1861 = vpop.f32.mrb[0].mxu0
        %v1862 = vpop.f32.mrb[0].mxu0
        %v1863 = vadd.f32 0.0, %v1862
        %v1864 = vpop.f32.mrb[0].mxu0
        %1865 = vmatprep.mubr.bf16.mxu0 0
        %1866 = vmatmul.mubr.bf16.gmra.mrb[0].mxu0 %v1550
        %v1867 = vpop.f32.mrb[0].mxu0
        %v1868 = vadd.f32 0.0, %v1867
        %v1869 = vpop.f32.mrb[0].mxu0
        %v1870 = vpop.f32.mrb[0].mxu0
        %v1871 = vadd.f32 0.0, %v1870
        %v1872 = vpop.f32.mrb[0].mxu0
        %1873 = vmatprep.mubr.bf16.mxu0 0
        %1874 = vmatmul.mubr.bf16.gmra.mrb[0].mxu0 %v1553
        %v1875 = vpop.f32.mrb[0].mxu0
        %v1876 = vadd.f32 0.0, %v1875
        %v1877 = vpop.f32.mrb[0].mxu0
        %v1878 = vpop.f32.mrb[0].mxu0
        %v1879 = vadd.f32 0.0, %v1878
        %v1880 = vpop.f32.mrb[0].mxu0
        %1881 = vmatprep.mubr.bf16.mxu0 0
        %1882 = vmatmul.mubr.bf16.gmra.mrb[0].mxu0 %v1556
        %v1883 = vpop.f32.mrb[0].mxu0
        %v1884 = vadd.f32 0.0, %v1883
        %v1885 = vpop.f32.mrb[0].mxu0
        %v1886 = vpop.f32.mrb[0].mxu0
        %v1887 = vadd.f32 0.0, %v1886
        %v1888 = vpop.f32.mrb[0].mxu0
        %1889 = vmatprep.mubr.bf16.mxu0 0
        %1890 = vmatmul.mubr.bf16.gmra.mrb[0].mxu0 %v1559
        %v1891 = vpop.f32.mrb[0].mxu0
        %v1892 = vadd.f32 0.0, %v1891
        %v1893 = vpop.f32.mrb[0].mxu0
        %v1894 = vpop.f32.mrb[0].mxu0
        %v1895 = vadd.f32 0.0, %v1894
        %v1896 = vpop.f32.mrb[0].mxu0
        %1897 = vdwg.mxu0
        %v1898 = vmax.f32 %v1596, %v1612
        %v1899 = vmax.f32 %v1599, %v1615
        %v1900 = vmax.f32 %v1604, %v1620
        %v1901 = vmax.f32 %v1607, %v1623
        %v1902 = vmax.f32 %v1898, %v1628
        %v1903 = vmax.f32 %v1899, %v1631
        %v1904 = vmax.f32 %v1900, %v1636
        %v1905 = vmax.f32 %v1901, %v1639
        %v1906 = vmax.f32 %v1902, %v1644
        %v1907 = vmax.f32 %v1903, %v1647
        %v1908 = vmax.f32 %v1904, %v1652
        %v1909 = vmax.f32 %v1905, %v1655
        %v1910 = vmax.f32 %v1906, %v1660
        %v1911 = vmax.f32 %v1907, %v1663
        %v1912 = vmax.f32 %v1908, %v1668
        %v1913 = vmax.f32 %v1909, %v1671
        %v1914 = vmax.f32 %v1910, %v1676
        %v1915 = vmax.f32 %v1911, %v1679
        %v1916 = vmax.f32 %v1912, %v1684
        %v1917 = vmax.f32 %v1913, %v1687
        %v1918 = vmax.f32 %v1914, %v1692
        %v1919 = vmax.f32 %v1915, %v1695
        %v1920 = vmax.f32 %v1916, %v1700
        %v1921 = vmax.f32 %v1917, %v1703
        %v1922 = vmax.f32 %v1918, %v1708
        %v1923 = vmax.f32 %v1919, %v1711
        %v1924 = vmax.f32 %v1920, %v1716
        %v1925 = vmax.f32 %v1921, %v1719
        %v1926 = vmax.f32 %v1922, %v1724
        %v1927 = vmax.f32 %v1923, %v1727
        %v1928 = vmax.f32 %v1924, %v1732
        %v1929 = vmax.f32 %v1925, %v1735
        %v1930 = vmax.f32 %v1926, %v1740
        %v1931 = vmax.f32 %v1927, %v1743
        %v1932 = vmax.f32 %v1928, %v1748
        %v1933 = vmax.f32 %v1929, %v1751
        %v1934 = vmax.f32 %v1930, %v1756
        %v1935 = vmax.f32 %v1931, %v1759
        %v1936 = vmax.f32 %v1932, %v1764
        %v1937 = vmax.f32 %v1933, %v1767
        %v1938 = vmax.f32 %v1934, %v1772
        %v1939 = vmax.f32 %v1935, %v1775
        %v1940 = vmax.f32 %v1936, %v1780
        %v1941 = vmax.f32 %v1937, %v1783
        %v1942 = vmax.f32 %v1938, %v1788
        %v1943 = vmax.f32 %v1939, %v1791
        %v1944 = vmax.f32 %v1940, %v1796
        %v1945 = vmax.f32 %v1941, %v1799
        %v1946 = vmax.f32 %v1942, %v1804
        %v1947 = vmax.f32 %v1943, %v1807
        %v1948 = vmax.f32 %v1944, %v1812
        %v1949 = vmax.f32 %v1945, %v1815
        %v1950 = vmax.f32 %v1946, %v1820
        %v1951 = vmax.f32 %v1947, %v1823
        %v1952 = vmax.f32 %v1948, %v1828
        %v1953 = vmax.f32 %v1949, %v1831
        %v1954 = vmax.f32 %v1950, %v1836
        %v1955 = vmax.f32 %v1951, %v1839
        %v1956 = vmax.f32 %v1952, %v1844
        %v1957 = vmax.f32 %v1953, %v1847
        %v1958 = vmax.f32 %v1954, %v1852
        %v1959 = vmax.f32 %v1955, %v1855
        %v1960 = vmax.f32 %v1956, %v1860
        %v1961 = vmax.f32 %v1957, %v1863
        %v1962 = vmax.f32 %v1958, %v1868
        %v1963 = vmax.f32 %v1959, %v1871
        %v1964 = vmax.f32 %v1960, %v1876
        %v1965 = vmax.f32 %v1961, %v1879
        %v1966 = vmax.f32 %v1962, %v1884
        %v1967 = vmax.f32 %v1963, %v1887
        %v1968 = vmax.f32 %v1964, %v1892
        %v1969 = vmax.f32 %v1965, %v1895
        %v1970 = vsub.f32 %v1596, %v1966
        %v1971 = vsub.f32 %v1599, %v1967
        %v1972 = vsub.f32 %v1604, %v1968
        %v1973 = vsub.f32 %v1607, %v1969
        %v1974 = vmul.f32 %v1970, 1.442695
        %v1975 = vpow.pop %v1974
        %v1976 = vmul.f32 %v1971, 1.442695
        %v1977 = vpow.pop %v1976
        %v1978 = vmul.f32 %v1972, 1.442695
        %v1979 = vpow.pop %v1978
        %v1980 = vmul.f32 %v1973, 1.442695
        %v1981 = vpow.pop %v1980
        %v1982 = vadd.f32 %v1975, 0.0
        %v1983 = vadd.f32 %v1977, 0.0
        %v1984 = vadd.f32 %v1979, 0.0
        %v1985 = vadd.f32 %v1981, 0.0
        %vm1986 = vcmp.eq.s32.totalorder %v337, 0
        %vm1987 = vcmp.eq.s32.totalorder %v338, 0
        %vm1988 = vcmp.eq.s32.totalorder %v339, 0
        %vm1989 = vcmp.eq.s32.totalorder %v340, 0
        %v1990 = vsel %vm1986, %v1596, 0.0
        %v1991 = vsel %vm1987, %v1599, 0.0
        %v1992 = vsel %vm1988, %v1604, 0.0
        %v1993 = vsel %vm1989, %v1607, 0.0
        %v1994 = vsub.f32 %v1612, %v1966
        %v1995 = vsub.f32 %v1615, %v1967
        %v1996 = vsub.f32 %v1620, %v1968
        %v1997 = vsub.f32 %v1623, %v1969
        %v1998 = vmul.f32 %v1994, 1.442695
        %v1999 = vpow.pop %v1998
        %v2000 = vmul.f32 %v1995, 1.442695
        %v2001 = vpow.pop %v2000
        %v2002 = vmul.f32 %v1996, 1.442695
        %v2003 = vpow.pop %v2002
        %v2004 = vmul.f32 %v1997, 1.442695
        %v2005 = vpow.pop %v2004
        %v2006 = vadd.f32 %v1982, %v1999
        %v2007 = vadd.f32 %v1983, %v2001
        %v2008 = vadd.f32 %v1984, %v2003
        %v2009 = vadd.f32 %v1985, %v2005
        %vm2010 = vcmp.eq.s32.totalorder %v337, 1
        %vm2011 = vcmp.eq.s32.totalorder %v338, 1
        %vm2012 = vcmp.eq.s32.totalorder %v339, 1
        %vm2013 = vcmp.eq.s32.totalorder %v340, 1
        %v2014 = vsel %vm2010, %v1612, %v1990
        %v2015 = vsel %vm2011, %v1615, %v1991
        %v2016 = vsel %vm2012, %v1620, %v1992
        %v2017 = vsel %vm2013, %v1623, %v1993
        %v2018 = vsub.f32 %v1628, %v1966
        %v2019 = vsub.f32 %v1631, %v1967
        %v2020 = vsub.f32 %v1636, %v1968
        %v2021 = vsub.f32 %v1639, %v1969
        %v2022 = vmul.f32 %v2018, 1.442695
        %v2023 = vpow.pop %v2022
        %v2024 = vmul.f32 %v2019, 1.442695
        %v2025 = vpow.pop %v2024
        %v2026 = vmul.f32 %v2020, 1.442695
        %v2027 = vpow.pop %v2026
        %v2028 = vmul.f32 %v2021, 1.442695
        %v2029 = vpow.pop %v2028
        %v2030 = vadd.f32 %v2006, %v2023
        %v2031 = vadd.f32 %v2007, %v2025
        %v2032 = vadd.f32 %v2008, %v2027
        %v2033 = vadd.f32 %v2009, %v2029
        %vm2034 = vcmp.eq.s32.totalorder %v337, 2
        %vm2035 = vcmp.eq.s32.totalorder %v338, 2
        %vm2036 = vcmp.eq.s32.totalorder %v339, 2
        %vm2037 = vcmp.eq.s32.totalorder %v340, 2
        %v2038 = vsel %vm2034, %v1628, %v2014
        %v2039 = vsel %vm2035, %v1631, %v2015
        %v2040 = vsel %vm2036, %v1636, %v2016
        %v2041 = vsel %vm2037, %v1639, %v2017
        %v2042 = vsub.f32 %v1644, %v1966
        %v2043 = vsub.f32 %v1647, %v1967
        %v2044 = vsub.f32 %v1652, %v1968
        %v2045 = vsub.f32 %v1655, %v1969
        %v2046 = vmul.f32 %v2042, 1.442695
        %v2047 = vpow.pop %v2046
        %v2048 = vmul.f32 %v2043, 1.442695
        %v2049 = vpow.pop %v2048
        %v2050 = vmul.f32 %v2044, 1.442695
        %v2051 = vpow.pop %v2050
        %v2052 = vmul.f32 %v2045, 1.442695
        %v2053 = vpow.pop %v2052
        %v2054 = vadd.f32 %v2030, %v2047
        %v2055 = vadd.f32 %v2031, %v2049
        %v2056 = vadd.f32 %v2032, %v2051
        %v2057 = vadd.f32 %v2033, %v2053
        %vm2058 = vcmp.eq.s32.totalorder %v337, 3
        %vm2059 = vcmp.eq.s32.totalorder %v338, 3
        %vm2060 = vcmp.eq.s32.totalorder %v339, 3
        %vm2061 = vcmp.eq.s32.totalorder %v340, 3
        %v2062 = vsel %vm2058, %v1644, %v2038
        %v2063 = vsel %vm2059, %v1647, %v2039
        %v2064 = vsel %vm2060, %v1652, %v2040
        %v2065 = vsel %vm2061, %v1655, %v2041
        %v2066 = vsub.f32 %v1660, %v1966
        %v2067 = vsub.f32 %v1663, %v1967
        %v2068 = vsub.f32 %v1668, %v1968
        %v2069 = vsub.f32 %v1671, %v1969
        %v2070 = vmul.f32 %v2066, 1.442695
        %v2071 = vpow.pop %v2070
        %v2072 = vmul.f32 %v2067, 1.442695
        %v2073 = vpow.pop %v2072
        %v2074 = vmul.f32 %v2068, 1.442695
        %v2075 = vpow.pop %v2074
        %v2076 = vmul.f32 %v2069, 1.442695
        %v2077 = vpow.pop %v2076
        %v2078 = vadd.f32 %v2054, %v2071
        %v2079 = vadd.f32 %v2055, %v2073
        %v2080 = vadd.f32 %v2056, %v2075
        %v2081 = vadd.f32 %v2057, %v2077
        %vm2082 = vcmp.eq.s32.totalorder %v337, 4
        %vm2083 = vcmp.eq.s32.totalorder %v338, 4
        %vm2084 = vcmp.eq.s32.totalorder %v339, 4
        %vm2085 = vcmp.eq.s32.totalorder %v340, 4
        %v2086 = vsel %vm2082, %v1660, %v2062
        %v2087 = vsel %vm2083, %v1663, %v2063
        %v2088 = vsel %vm2084, %v1668, %v2064
        %v2089 = vsel %vm2085, %v1671, %v2065
        %v2090 = vsub.f32 %v1676, %v1966
        %v2091 = vsub.f32 %v1679, %v1967
        %v2092 = vsub.f32 %v1684, %v1968
        %v2093 = vsub.f32 %v1687, %v1969
        %v2094 = vmul.f32 %v2090, 1.442695
        %v2095 = vpow.pop %v2094
        %v2096 = vmul.f32 %v2091, 1.442695
        %v2097 = vpow.pop %v2096
        %v2098 = vmul.f32 %v2092, 1.442695
        %v2099 = vpow.pop %v2098
        %v2100 = vmul.f32 %v2093, 1.442695
        %v2101 = vpow.pop %v2100
        %v2102 = vadd.f32 %v2078, %v2095
        %v2103 = vadd.f32 %v2079, %v2097
        %v2104 = vadd.f32 %v2080, %v2099
        %v2105 = vadd.f32 %v2081, %v2101
        %vm2106 = vcmp.eq.s32.totalorder %v337, 5
        %vm2107 = vcmp.eq.s32.totalorder %v338, 5
        %vm2108 = vcmp.eq.s32.totalorder %v339, 5
        %vm2109 = vcmp.eq.s32.totalorder %v340, 5
        %v2110 = vsel %vm2106, %v1676, %v2086
        %v2111 = vsel %vm2107, %v1679, %v2087
        %v2112 = vsel %vm2108, %v1684, %v2088
        %v2113 = vsel %vm2109, %v1687, %v2089
        %v2114 = vsub.f32 %v1692, %v1966
        %v2115 = vsub.f32 %v1695, %v1967
        %v2116 = vsub.f32 %v1700, %v1968
        %v2117 = vsub.f32 %v1703, %v1969
        %v2118 = vmul.f32 %v2114, 1.442695
        %v2119 = vpow.pop %v2118
        %v2120 = vmul.f32 %v2115, 1.442695
        %v2121 = vpow.pop %v2120
        %v2122 = vmul.f32 %v2116, 1.442695
        %v2123 = vpow.pop %v2122
        %v2124 = vmul.f32 %v2117, 1.442695
        %v2125 = vpow.pop %v2124
        %v2126 = vadd.f32 %v2102, %v2119
        %v2127 = vadd.f32 %v2103, %v2121
        %v2128 = vadd.f32 %v2104, %v2123
        %v2129 = vadd.f32 %v2105, %v2125
        %vm2130 = vcmp.eq.s32.totalorder %v337, 6
        %vm2131 = vcmp.eq.s32.totalorder %v338, 6
        %vm2132 = vcmp.eq.s32.totalorder %v339, 6
        %vm2133 = vcmp.eq.s32.totalorder %v340, 6
        %v2134 = vsel %vm2130, %v1692, %v2110
        %v2135 = vsel %vm2131, %v1695, %v2111
        %v2136 = vsel %vm2132, %v1700, %v2112
        %v2137 = vsel %vm2133, %v1703, %v2113
        %v2138 = vsub.f32 %v1708, %v1966
        %v2139 = vsub.f32 %v1711, %v1967
        %v2140 = vsub.f32 %v1716, %v1968
        %v2141 = vsub.f32 %v1719, %v1969
        %v2142 = vmul.f32 %v2138, 1.442695
        %v2143 = vpow.pop %v2142
        %v2144 = vmul.f32 %v2139, 1.442695
        %v2145 = vpow.pop %v2144
        %v2146 = vmul.f32 %v2140, 1.442695
        %v2147 = vpow.pop %v2146
        %v2148 = vmul.f32 %v2141, 1.442695
        %v2149 = vpow.pop %v2148
        %v2150 = vadd.f32 %v2126, %v2143
        %v2151 = vadd.f32 %v2127, %v2145
        %v2152 = vadd.f32 %v2128, %v2147
        %v2153 = vadd.f32 %v2129, %v2149
        %vm2154 = vcmp.eq.s32.totalorder %v337, 7
        %vm2155 = vcmp.eq.s32.totalorder %v338, 7
        %vm2156 = vcmp.eq.s32.totalorder %v339, 7
        %vm2157 = vcmp.eq.s32.totalorder %v340, 7
        %v2158 = vsel %vm2154, %v1708, %v2134
        %v2159 = vsel %vm2155, %v1711, %v2135
        %v2160 = vsel %vm2156, %v1716, %v2136
        %v2161 = vsel %vm2157, %v1719, %v2137
        %v2162 = vsub.f32 %v1724, %v1966
        %v2163 = vsub.f32 %v1727, %v1967
        %v2164 = vsub.f32 %v1732, %v1968
        %v2165 = vsub.f32 %v1735, %v1969
        %v2166 = vmul.f32 %v2162, 1.442695
        %v2167 = vpow.pop %v2166
        %v2168 = vmul.f32 %v2163, 1.442695
        %v2169 = vpow.pop %v2168
        %v2170 = vmul.f32 %v2164, 1.442695
        %v2171 = vpow.pop %v2170
        %v2172 = vmul.f32 %v2165, 1.442695
        %v2173 = vpow.pop %v2172
        %v2174 = vadd.f32 %v2150, %v2167
        %v2175 = vadd.f32 %v2151, %v2169
        %v2176 = vadd.f32 %v2152, %v2171
        %v2177 = vadd.f32 %v2153, %v2173
        %vm2178 = vcmp.eq.s32.totalorder %v337, 8
        %vm2179 = vcmp.eq.s32.totalorder %v338, 8
        %vm2180 = vcmp.eq.s32.totalorder %v339, 8
        %vm2181 = vcmp.eq.s32.totalorder %v340, 8
        %v2182 = vsel %vm2178, %v1724, %v2158
        %v2183 = vsel %vm2179, %v1727, %v2159
        %v2184 = vsel %vm2180, %v1732, %v2160
        %v2185 = vsel %vm2181, %v1735, %v2161
        %v2186 = vsub.f32 %v1740, %v1966
        %v2187 = vsub.f32 %v1743, %v1967
        %v2188 = vsub.f32 %v1748, %v1968
        %v2189 = vsub.f32 %v1751, %v1969
        %v2190 = vmul.f32 %v2186, 1.442695
        %v2191 = vpow.pop %v2190
        %v2192 = vmul.f32 %v2187, 1.442695
        %v2193 = vpow.pop %v2192
        %v2194 = vmul.f32 %v2188, 1.442695
        %v2195 = vpow.pop %v2194
        %v2196 = vmul.f32 %v2189, 1.442695
        %v2197 = vpow.pop %v2196
        %v2198 = vadd.f32 %v2174, %v2191
        %v2199 = vadd.f32 %v2175, %v2193
        %v2200 = vadd.f32 %v2176, %v2195
        %v2201 = vadd.f32 %v2177, %v2197
        %vm2202 = vcmp.eq.s32.totalorder %v337, 9
        %vm2203 = vcmp.eq.s32.totalorder %v338, 9
        %vm2204 = vcmp.eq.s32.totalorder %v339, 9
        %vm2205 = vcmp.eq.s32.totalorder %v340, 9
        %v2206 = vsel %vm2202, %v1740, %v2182
        %v2207 = vsel %vm2203, %v1743, %v2183
        %v2208 = vsel %vm2204, %v1748, %v2184
        %v2209 = vsel %vm2205, %v1751, %v2185
        %v2210 = vsub.f32 %v1756, %v1966
        %v2211 = vsub.f32 %v1759, %v1967
        %v2212 = vsub.f32 %v1764, %v1968
        %v2213 = vsub.f32 %v1767, %v1969
        %v2214 = vmul.f32 %v2210, 1.442695
        %v2215 = vpow.pop %v2214
        %v2216 = vmul.f32 %v2211, 1.442695
        %v2217 = vpow.pop %v2216
        %v2218 = vmul.f32 %v2212, 1.442695
        %v2219 = vpow.pop %v2218
        %v2220 = vmul.f32 %v2213, 1.442695
        %v2221 = vpow.pop %v2220
        %v2222 = vadd.f32 %v2198, %v2215
        %v2223 = vadd.f32 %v2199, %v2217
        %v2224 = vadd.f32 %v2200, %v2219
        %v2225 = vadd.f32 %v2201, %v2221
        %vm2226 = vcmp.eq.s32.totalorder %v337, 10
        %vm2227 = vcmp.eq.s32.totalorder %v338, 10
        %vm2228 = vcmp.eq.s32.totalorder %v339, 10
        %vm2229 = vcmp.eq.s32.totalorder %v340, 10
        %v2230 = vsel %vm2226, %v1756, %v2206
        %v2231 = vsel %vm2227, %v1759, %v2207
        %v2232 = vsel %vm2228, %v1764, %v2208
        %v2233 = vsel %vm2229, %v1767, %v2209
        %v2234 = vsub.f32 %v1772, %v1966
        %v2235 = vsub.f32 %v1775, %v1967
        %v2236 = vsub.f32 %v1780, %v1968
        %v2237 = vsub.f32 %v1783, %v1969
        %v2238 = vmul.f32 %v2234, 1.442695
        %v2239 = vpow.pop %v2238
        %v2240 = vmul.f32 %v2235, 1.442695
        %v2241 = vpow.pop %v2240
        %v2242 = vmul.f32 %v2236, 1.442695
        %v2243 = vpow.pop %v2242
        %v2244 = vmul.f32 %v2237, 1.442695
        %v2245 = vpow.pop %v2244
        %v2246 = vadd.f32 %v2222, %v2239
        %v2247 = vadd.f32 %v2223, %v2241
        %v2248 = vadd.f32 %v2224, %v2243
        %v2249 = vadd.f32 %v2225, %v2245
        %vm2250 = vcmp.eq.s32.totalorder %v337, 11
        %vm2251 = vcmp.eq.s32.totalorder %v338, 11
        %vm2252 = vcmp.eq.s32.totalorder %v339, 11
        %vm2253 = vcmp.eq.s32.totalorder %v340, 11
        %v2254 = vsel %vm2250, %v1772, %v2230
        %v2255 = vsel %vm2251, %v1775, %v2231
        %v2256 = vsel %vm2252, %v1780, %v2232
        %v2257 = vsel %vm2253, %v1783, %v2233
        %v2258 = vsub.f32 %v1788, %v1966
        %v2259 = vsub.f32 %v1791, %v1967
        %v2260 = vsub.f32 %v1796, %v1968
        %v2261 = vsub.f32 %v1799, %v1969
        %v2262 = vmul.f32 %v2258, 1.442695
        %v2263 = vpow.pop %v2262
        %v2264 = vmul.f32 %v2259, 1.442695
        %v2265 = vpow.pop %v2264
        %v2266 = vmul.f32 %v2260, 1.442695
        %v2267 = vpow.pop %v2266
        %v2268 = vmul.f32 %v2261, 1.442695
        %v2269 = vpow.pop %v2268
        %v2270 = vadd.f32 %v2246, %v2263
        %v2271 = vadd.f32 %v2247, %v2265
        %v2272 = vadd.f32 %v2248, %v2267
        %v2273 = vadd.f32 %v2249, %v2269
        %vm2274 = vcmp.eq.s32.totalorder %v337, 12
        %vm2275 = vcmp.eq.s32.totalorder %v338, 12
        %vm2276 = vcmp.eq.s32.totalorder %v339, 12
        %vm2277 = vcmp.eq.s32.totalorder %v340, 12
        %v2278 = vsel %vm2274, %v1788, %v2254
        %v2279 = vsel %vm2275, %v1791, %v2255
        %v2280 = vsel %vm2276, %v1796, %v2256
        %v2281 = vsel %vm2277, %v1799, %v2257
        %v2282 = vsub.f32 %v1804, %v1966
        %v2283 = vsub.f32 %v1807, %v1967
        %v2284 = vsub.f32 %v1812, %v1968
        %v2285 = vsub.f32 %v1815, %v1969
        %v2286 = vmul.f32 %v2282, 1.442695
        %v2287 = vpow.pop %v2286
        %v2288 = vmul.f32 %v2283, 1.442695
        %v2289 = vpow.pop %v2288
        %v2290 = vmul.f32 %v2284, 1.442695
        %v2291 = vpow.pop %v2290
        %v2292 = vmul.f32 %v2285, 1.442695
        %v2293 = vpow.pop %v2292
        %v2294 = vadd.f32 %v2270, %v2287
        %v2295 = vadd.f32 %v2271, %v2289
        %v2296 = vadd.f32 %v2272, %v2291
        %v2297 = vadd.f32 %v2273, %v2293
        %vm2298 = vcmp.eq.s32.totalorder %v337, 13
        %vm2299 = vcmp.eq.s32.totalorder %v338, 13
        %vm2300 = vcmp.eq.s32.totalorder %v339, 13
        %vm2301 = vcmp.eq.s32.totalorder %v340, 13
        %v2302 = vsel %vm2298, %v1804, %v2278
        %v2303 = vsel %vm2299, %v1807, %v2279
        %v2304 = vsel %vm2300, %v1812, %v2280
        %v2305 = vsel %vm2301, %v1815, %v2281
        %v2306 = vsub.f32 %v1820, %v1966
        %v2307 = vsub.f32 %v1823, %v1967
        %v2308 = vsub.f32 %v1828, %v1968
        %v2309 = vsub.f32 %v1831, %v1969
        %v2310 = vmul.f32 %v2306, 1.442695
        %v2311 = vpow.pop %v2310
        %v2312 = vmul.f32 %v2307, 1.442695
        %v2313 = vpow.pop %v2312
        %v2314 = vmul.f32 %v2308, 1.442695
        %v2315 = vpow.pop %v2314
        %v2316 = vmul.f32 %v2309, 1.442695
        %v2317 = vpow.pop %v2316
        %v2318 = vadd.f32 %v2294, %v2311
        %v2319 = vadd.f32 %v2295, %v2313
        %v2320 = vadd.f32 %v2296, %v2315
        %v2321 = vadd.f32 %v2297, %v2317
        %vm2322 = vcmp.eq.s32.totalorder %v337, 14
        %vm2323 = vcmp.eq.s32.totalorder %v338, 14
        %vm2324 = vcmp.eq.s32.totalorder %v339, 14
        %vm2325 = vcmp.eq.s32.totalorder %v340, 14
        %v2326 = vsel %vm2322, %v1820, %v2302
        %v2327 = vsel %vm2323, %v1823, %v2303
        %v2328 = vsel %vm2324, %v1828, %v2304
        %v2329 = vsel %vm2325, %v1831, %v2305
        %v2330 = vsub.f32 %v1836, %v1966
        %v2331 = vsub.f32 %v1839, %v1967
        %v2332 = vsub.f32 %v1844, %v1968
        %v2333 = vsub.f32 %v1847, %v1969
        %v2334 = vmul.f32 %v2330, 1.442695
        %v2335 = vpow.pop %v2334
        %v2336 = vmul.f32 %v2331, 1.442695
        %v2337 = vpow.pop %v2336
        %v2338 = vmul.f32 %v2332, 1.442695
        %v2339 = vpow.pop %v2338
        %v2340 = vmul.f32 %v2333, 1.442695
        %v2341 = vpow.pop %v2340
        %v2342 = vadd.f32 %v2318, %v2335
        %v2343 = vadd.f32 %v2319, %v2337
        %v2344 = vadd.f32 %v2320, %v2339
        %v2345 = vadd.f32 %v2321, %v2341
        %vm2346 = vcmp.eq.s32.totalorder %v337, 15
        %vm2347 = vcmp.eq.s32.totalorder %v338, 15
        %vm2348 = vcmp.eq.s32.totalorder %v339, 15
        %vm2349 = vcmp.eq.s32.totalorder %v340, 15
        %v2350 = vsel %vm2346, %v1836, %v2326
        %v2351 = vsel %vm2347, %v1839, %v2327
        %v2352 = vsel %vm2348, %v1844, %v2328
        %v2353 = vsel %vm2349, %v1847, %v2329
        %v2354 = vsub.f32 %v1852, %v1966
        %v2355 = vsub.f32 %v1855, %v1967
        %v2356 = vsub.f32 %v1860, %v1968
        %v2357 = vsub.f32 %v1863, %v1969
        %v2358 = vmul.f32 %v2354, 1.442695
        %v2359 = vpow.pop %v2358
        %v2360 = vmul.f32 %v2355, 1.442695
        %v2361 = vpow.pop %v2360
        %v2362 = vmul.f32 %v2356, 1.442695
        %v2363 = vpow.pop %v2362
        %v2364 = vmul.f32 %v2357, 1.442695
        %v2365 = vpow.pop %v2364
        %v2366 = vadd.f32 %v2342, %v2359
        %v2367 = vadd.f32 %v2343, %v2361
        %v2368 = vadd.f32 %v2344, %v2363
        %v2369 = vadd.f32 %v2345, %v2365
        %vm2370 = vcmp.eq.s32.totalorder %v337, 16
        %vm2371 = vcmp.eq.s32.totalorder %v338, 16
        %vm2372 = vcmp.eq.s32.totalorder %v339, 16
        %vm2373 = vcmp.eq.s32.totalorder %v340, 16
        %v2374 = vsel %vm2370, %v1852, %v2350
        %v2375 = vsel %vm2371, %v1855, %v2351
        %v2376 = vsel %vm2372, %v1860, %v2352
        %v2377 = vsel %vm2373, %v1863, %v2353
        %v2378 = vsub.f32 %v1868, %v1966
        %v2379 = vsub.f32 %v1871, %v1967
        %v2380 = vsub.f32 %v1876, %v1968
        %v2381 = vsub.f32 %v1879, %v1969
        %v2382 = vmul.f32 %v2378, 1.442695
        %v2383 = vpow.pop %v2382
        %v2384 = vmul.f32 %v2379, 1.442695
        %v2385 = vpow.pop %v2384
        %v2386 = vmul.f32 %v2380, 1.442695
        %v2387 = vpow.pop %v2386
        %v2388 = vmul.f32 %v2381, 1.442695
        %v2389 = vpow.pop %v2388
        %v2390 = vadd.f32 %v2366, %v2383
        %v2391 = vadd.f32 %v2367, %v2385
        %v2392 = vadd.f32 %v2368, %v2387
        %v2393 = vadd.f32 %v2369, %v2389
        %vm2394 = vcmp.eq.s32.totalorder %v337, 17
        %vm2395 = vcmp.eq.s32.totalorder %v338, 17
        %vm2396 = vcmp.eq.s32.totalorder %v339, 17
        %vm2397 = vcmp.eq.s32.totalorder %v340, 17
        %v2398 = vsel %vm2394, %v1868, %v2374
        %v2399 = vsel %vm2395, %v1871, %v2375
        %v2400 = vsel %vm2396, %v1876, %v2376
        %v2401 = vsel %vm2397, %v1879, %v2377
        %v2402 = vsub.f32 %v1884, %v1966
        %v2403 = vsub.f32 %v1887, %v1967
        %v2404 = vsub.f32 %v1892, %v1968
        %v2405 = vsub.f32 %v1895, %v1969
        %v2406 = vmul.f32 %v2402, 1.442695
        %v2407 = vpow.pop %v2406
        %v2408 = vmul.f32 %v2403, 1.442695
        %v2409 = vpow.pop %v2408
        %v2410 = vmul.f32 %v2404, 1.442695
        %v2411 = vpow.pop %v2410
        %v2412 = vmul.f32 %v2405, 1.442695
        %v2413 = vpow.pop %v2412
        %v2414 = vadd.f32 %v2390, %v2407
        %v2415 = vadd.f32 %v2391, %v2409
        %v2416 = vadd.f32 %v2392, %v2411
        %v2417 = vadd.f32 %v2393, %v2413
        %vm2418 = vcmp.eq.s32.totalorder %v337, 18
        %vm2419 = vcmp.eq.s32.totalorder %v338, 18
        %vm2420 = vcmp.eq.s32.totalorder %v339, 18
        %vm2421 = vcmp.eq.s32.totalorder %v340, 18
        %v2422 = vsel %vm2418, %v1884, %v2398
        %v2423 = vsel %vm2419, %v1887, %v2399
        %v2424 = vsel %vm2420, %v1892, %v2400
        %v2425 = vsel %vm2421, %v1895, %v2401
        %v2426 = vsub.f32 %v2422, %v1966
        %v2427 = vsub.f32 %v2423, %v1967
        %v2428 = vsub.f32 %v2424, %v1968
        %v2429 = vsub.f32 %v2425, %v1969
        %v2430 = vlog2.pop %v2414
        %v2431 = vmul.f32 %v2430, 0.6931472
        %v2432 = vlog2.pop %v2415
        %v2433 = vmul.f32 %v2432, 0.6931472
        %v2434 = vlog2.pop %v2416
        %v2435 = vmul.f32 %v2434, 0.6931472
        %v2436 = vlog2.pop %v2417
        %v2437 = vmul.f32 %v2436, 0.6931472
        %v2438 = vsub.f32 %v2426, %v2431
        %v2439 = vsub.f32 %v2427, %v2433
        %v2440 = vsub.f32 %v2428, %v2435
        %v2441 = vsub.f32 %v2429, %v2437
        %2442 = vst [vmem:[%s265] sm:$0xff] %v2438
        %2443 = vst [vmem:[%s265 + $0x8] sm:$0xff] %v2439
        %2444 = vst [vmem:[%s265 + $0x10] sm:$0xff] %v2440
        %2445 = vst [vmem:[%s265 + $0x18] sm:$0xff] %v2441
        %s2446 = sand.u32 %s152, 1
        %s2447 = scalar_lea.sflag [#allocation3], %s2446
        %s2448 = sand.u32 %s152, 1
        %s2449 = smul.addr %s2448, 32
        %s2450 = scalar_lea.vmem [#allocation2], %s2449
        // Predicated region
        $region37: #{tpu_custom_call.1} parent=35 // pred_check
          %p2451 = pneg %p162
        $region38: #{tpu_custom_call.1} parent=35 // pred_check_branch
          %2453 = sbr.rel (%p2451) target = $region40
        $region39: #{tpu_custom_call.1} parent=35 // pred_region
          %s2454 = smul.u32 4, %s25
          %s2456 = ssub.s32 512, 512
          %2457 = vsyncadd %s2447, %s2456
          %s2458 = smul.addr %s24, 4
          %s2459 = sadd.s32 %s2454, %s2458
          %s2460 = smul.addr %s23, 8
          %s2461 = sadd.s32 %s2459, %s2460
          %s2462 = smul.addr %s2461, 128
          %s2463 = scalar_lea.hbm %s4, %s2462
          %s2464 = sshll.u32 %s2450, 4
          %s2465 = int_to_ptr.vmem [resolvable:$true] %s2464
          %2470 = dma.vmem_to_hbm [thread:$0]  %s2465, 512, %s2463, %s2447, 128, 128, 8
        $region40: #{tpu_custom_call.1} parent=35 // pred_fallthru
          _
      $region36: #{tpu_custom_call.1} parent=5 // pred_fallthru
        _
      %p2471 = scmp.le.s32.totalorder 2, %s13
      // Predicated region
      $region41: #{tpu_custom_call.1} parent=5 // pred_check
        %p2472 = pneg %p2471
      $region42: #{tpu_custom_call.1} parent=5 // pred_check_branch
        %2474 = sbr.rel (%p2472) target = $region44
      $region43: #{tpu_custom_call.1} parent=5 // pred_region
        %s2475 = ssub.s32 %s13, 2
        // Predicated region
        $region45: #{tpu_custom_call.1} parent=43 // pred_check
          %p2476 = pneg %p168
        $region46: #{tpu_custom_call.1} parent=43 // pred_check_branch
          %2478 = sbr.rel (%p2476) target = $region48
        $region47: #{tpu_custom_call.1} parent=43 // pred_region
          %s2479 = sand.u32 %s153, 1
          %s2480 = scalar_lea.sflag [#allocation3], %s2479
          %s2481 = sand.u32 %s153, 1
          %s2482 = smul.addr %s2481, 32
          %s2483 = scalar_lea.vmem [#allocation2], %s2482
          %2484 = dma.done %s2480, 512
        $region48: #{tpu_custom_call.1} parent=43 // pred_fallthru
          _
      $region44: #{tpu_custom_call.1} parent=5 // pred_fallthru
        _
    $region6: #{tpu_custom_call.1} parent=1 // loop_footer
      %s17 = sadd.s32 1, %s13
    $region7: #{tpu_custom_call.1} parent=1 // loop_footer_branch
      %12 = sbr.rel target = $region3
    $region8: #{tpu_custom_call.1} parent=1 // loop_exit
      _
    %2485 = vsyncpa [#allocation3], 1
    %s2486 = scalar_lea.sflag [#allocation3], 1
    %2487 = vsyncpa %s2486, 1

</llo_original>
